<compile_context>
chip_gen: v5e
topology: v5e:2x2
jax: 0.10.0
libtpu: 0.0.40
codegen_flags: <defaults>
</compile_context>

<pallas_src>
import functools

import jax
import jax.numpy as jnp
from jax import lax
from jax.experimental import pallas as pl
from jax.experimental.pallas import tpu as pltpu

V_TH = 1.0  # IF-neuron threshold (single step, fresh membrane state v0 = 0)


# ---------------- fused Pallas kernel (B samples per grid step) ----------------

def fused_net_kernel(pt_ref, wc_ref, thr1_ref, wl_ref, thr2_ref, out_ref):
    # pt_ref   : (1, K, B*P)     bf16 im2col patches, lane index = b*P + p
    # wc_ref   : (Cout, K)       bf16 conv weight with BN scale folded in
    # thr1_ref : (Cout, 1)       f32  per-channel threshold  V_TH - bn_shift
    # wl_ref   : (Cout, P, Ncls) bf16 linear weight in NCHW-flatten order
    # thr2_ref : (1, Ncls)       f32  per-class threshold    V_TH - lin_bias
    # out_ref  : (B, Ncls)       f32  output spikes
    cout = wc_ref.shape[0]
    p = wl_ref.shape[1]
    b = out_ref.shape[0]

    # Conv (+ folded BN scale) as a single lane-dense MXU call.
    yT = jnp.dot(wc_ref[...], pt_ref[0],
                 preferred_element_type=jnp.float32)           # (Cout, B*P) f32

    # IF spike (lif1): exact 0/1, so the bf16 cast below is lossless.
    s1 = (yT >= thr1_ref[...]).astype(jnp.bfloat16)            # (Cout, B*P)
    s1 = s1.reshape(cout, b, p)                                 # (Cout, B, P)

    # Linear (+ folded bias) + IF spike (lif2): Cout accumulating (B,P)@(P,Ncls)
    # dots, contraction in NCHW-flatten order (c-major) to match torch Flatten.
    acc = jnp.dot(s1[0], wl_ref[0], preferred_element_type=jnp.float32)
    for c in range(1, cout):                                    # static, unrolled
        acc = acc + jnp.dot(s1[c], wl_ref[c],
                            preferred_element_type=jnp.float32)  # (B, Ncls)

    out_ref[...] = (acc >= thr2_ref[...]).astype(out_ref.dtype)


# ---------------- wrapper (im2col / blocking / parameter folding) ----------------

def net_forward(x_nchw, params, *, batch_block=128):
    N, Cin, H, W = x_nchw.shape
    KH = KW = 3
    S = 2
    OH = (H - KH) // S + 1
    OW = (W - KW) // S + 1
    P = OH * OW
    K = Cin * KH * KW
    Cout = params["conv_w"].shape[0]
    n_cls = params["lin_w"].shape[0]

    # Batch block: multiple of 8 (sublane-aligned 2-D output store) unless it
    # covers the whole (padded) batch. Sweep upward on v6e/v5e for big batches;
    # keep B <= N/2 on v7x so both TensorCores get grid steps.
    B = max(1, min(batch_block, N))
    if B < N:
        B = max(8, (B // 8) * 8)
    NB = -(-N // B)
    N_pad = NB * B

    # im2col in one XLA op. Patch-channel order is (ci, kh, kw), matching the
    # torch Conv2d weight flatten; spatial order (oh, ow) matches NCHW Flatten.
    x_bf16 = x_nchw.astype(jnp.bfloat16)
    patches = lax.conv_general_dilated_patches(
        x_bf16, filter_shape=(KH, KW), window_strides=(S, S), padding="VALID",
        dimension_numbers=("NCHW", "OIHW", "NCHW"))             # (N, K, OH, OW)
    patches = patches.reshape(N, K, P)
    if N_pad != N:
        patches = jnp.pad(patches, ((0, N_pad - N), (0, 0), (0, 0)))
    # Concatenate the B samples of each block along the lane axis: (NB, K, B*P)
    patches = (patches.reshape(NB, B, K, P)
               .transpose(0, 2, 1, 3)
               .reshape(NB, K, B * P))

    # Fold BatchNorm2d (inference running stats, eps=1e-5) into the conv weight
    # and a per-channel threshold; fold the Linear bias into per-class thresholds.
    eps = 1e-5
    scale = params["bn_gamma"] / jnp.sqrt(params["bn_var"] + eps)       # (Cout,)
    shift = params["bn_beta"] - params["bn_mean"] * scale               # (Cout,)
    wc = (params["conv_w"].astype(jnp.float32)
          * scale[:, None, None, None]).reshape(Cout, K).astype(jnp.bfloat16)
    thr1 = (V_TH - shift).reshape(Cout, 1).astype(jnp.float32)

    # Linear weight rearranged once to (Cout, P, Ncls) so the in-kernel
    # contraction matches torch Flatten-on-NCHW semantics with no relayout.
    wl = (params["lin_w"].astype(jnp.float32)
          .reshape(n_cls, Cout, P).transpose(1, 2, 0)).astype(jnp.bfloat16)
    thr2 = (V_TH - params["lin_b"]).reshape(1, n_cls).astype(jnp.float32)

    out = pl.pallas_call(
        fused_net_kernel,
        out_shape=jax.ShapeDtypeStruct((N_pad, n_cls), jnp.float32),
        grid=(NB,),
        in_specs=[
            pl.BlockSpec((1, K, B * P), lambda n: (n, 0, 0)),
            pl.BlockSpec((Cout, K), lambda n: (0, 0)),
            pl.BlockSpec((Cout, 1), lambda n: (0, 0)),
            pl.BlockSpec((Cout, P, n_cls), lambda n: (0, 0, 0)),
            pl.BlockSpec((1, n_cls), lambda n: (0, 0)),
        ],
        out_specs=pl.BlockSpec((B, n_cls), lambda n: (n, 0)),
        compiler_params=pltpu.CompilerParams(
            dimension_semantics=("parallel",),
            vmem_limit_bytes=32 * 1024 * 1024),
    )(patches, wc, thr1, wl, thr2)

    return out[:N]


# ---------------- deterministic parameter init + driver ----------------

if __name__ == "__main__":
    in_channels = 2
    channels = 8
    N = 16
    H = W = 33                      # -> conv output 16x16, Linear in = 16*16*channels
    F_in = 16 * 16 * channels

    key = jax.random.PRNGKey(0)
    kx, kc, kg, kb, km, kv, klw, klb = jax.random.split(key, 8)

    x = jax.random.normal(kx, (N, in_channels, H, W), dtype=jnp.float32)

    params = {
        "conv_w":  0.3 * jax.random.normal(kc, (channels, in_channels, 3, 3), jnp.float32),
        "bn_gamma": 1.0 + 0.1 * jax.random.normal(kg, (channels,), jnp.float32),
        "bn_beta":  0.1 * jax.random.normal(kb, (channels,), jnp.float32),
        "bn_mean":  0.05 * jax.random.normal(km, (channels,), jnp.float32),
        "bn_var":   1.0 + 0.1 * jax.random.uniform(kv, (channels,), jnp.float32),
        "lin_w":    0.05 * jax.random.normal(klw, (10, F_in), jnp.float32),
        "lin_b":    0.05 * jax.random.normal(klb, (10,), jnp.float32),
    }

    # batch_block=8 -> grid of 2 steps (both v7x TensorCores busy); sweep larger
    # blocks on v5e/v6e where the kernel is HBM-bound on the patch stream.
    fwd = jax.jit(functools.partial(net_forward, batch_block=8))
    out = jax.block_until_ready(fwd(x, params))

    assert out.shape == (N, 10), out.shape
    assert out.dtype == jnp.float32
    # spikes must be exactly 0/1
    assert bool(jnp.all((out == 0.0) | (out == 1.0)))
    print("KERNEL_OK")
</pallas_src>

<mosaic_0001>
module attributes {stable_mosaic.version = 11 : i64} {
  func.func @fused_net_kernel(%arg0: i32, %arg1: memref<1x18x2048xbf16, #tpu.memory_space<vmem>>, %arg2: memref<8x18xbf16, #tpu.memory_space<vmem>>, %arg3: memref<8x1xf32, #tpu.memory_space<vmem>>, %arg4: memref<8x256x10xbf16, #tpu.memory_space<vmem>>, %arg5: memref<1x10xf32, #tpu.memory_space<vmem>>, %arg6: memref<8x10xf32, #tpu.memory_space<vmem>>) attributes {dimension_semantics = [#tpu.dimension_semantics<parallel>], iteration_bounds = array<i64: 2>, scalar_prefetch = 0 : i64, scratch_operands = 0 : i64, tpu.core_type = #tpu.core_type<tc>, window_params = [{transform_indices = @transform_0, window_bounds = array<i64: 1, 18, 2048>}, {pipeline_mode = #tpu.pipeline_mode<synchronous>, transform_indices = @transform_1, window_bounds = array<i64: 8, 18>}, {pipeline_mode = #tpu.pipeline_mode<synchronous>, transform_indices = @transform_2, window_bounds = array<i64: 8, 1>}, {pipeline_mode = #tpu.pipeline_mode<synchronous>, transform_indices = @transform_3, window_bounds = array<i64: 8, 256, 10>}, {pipeline_mode = #tpu.pipeline_mode<synchronous>, transform_indices = @transform_4, window_bounds = array<i64: 1, 10>}, {transform_indices = @transform_5, window_bounds = array<i64: 8, 10>}]} {
    %c0 = arith.constant 0 : index
    %c0_0 = arith.constant 0 : index
    %0 = vector.load %arg2[%c0, %c0_0] : memref<8x18xbf16, #tpu.memory_space<vmem>>, vector<8x18xbf16>
    %c0_1 = arith.constant 0 : index
    %c0_2 = arith.constant 0 : index
    %c0_3 = arith.constant 0 : index
    %1 = vector.load %arg1[%c0_1, %c0_2, %c0_3] : memref<1x18x2048xbf16, #tpu.memory_space<vmem>>, vector<1x18x2048xbf16>
    %2 = vector.shape_cast %1 : vector<1x18x2048xbf16> to vector<18x2048xbf16>
    %cst = arith.constant dense<0.000000e+00> : vector<8x2048xf32>
    %3 = tpu.matmul %0, %2, %cst {dimension_numbers = #tpu.dot_dimension_numbers<[1], [0], [0], [1], [0, 0, 1, 1], [], []>} : vector<8x18xbf16>, vector<18x2048xbf16>, vector<8x2048xf32> -> vector<8x2048xf32>
    %c0_4 = arith.constant 0 : index
    %c0_5 = arith.constant 0 : index
    %4 = vector.load %arg3[%c0_4, %c0_5] : memref<8x1xf32, #tpu.memory_space<vmem>>, vector<8x1xf32>
    %5 = vector.broadcast %4 : vector<8x1xf32> to vector<8x2048xf32>
    %6 = arith.cmpf oge, %3, %5 : vector<8x2048xf32>
    %7 = arith.extui %6 : vector<8x2048xi1> to vector<8x2048xi32>
    %8 = arith.sitofp %7 : vector<8x2048xi32> to vector<8x2048xf32>
    %9 = arith.truncf %8 : vector<8x2048xf32> to vector<8x2048xbf16>
    %10 = vector.shape_cast %9 : vector<8x2048xbf16> to vector<8x8x256xbf16>
    %11 = vector.extract_strided_slice %10 {offsets = [0, 0, 0], sizes = [1, 8, 256], strides = [1, 1, 1]} : vector<8x8x256xbf16> to vector<1x8x256xbf16>
    %12 = vector.shape_cast %11 : vector<1x8x256xbf16> to vector<8x256xbf16>
    %c0_6 = arith.constant 0 : index
    %c0_7 = arith.constant 0 : index
    %c0_8 = arith.constant 0 : index
    %13 = vector.load %arg4[%c0_6, %c0_7, %c0_8] : memref<8x256x10xbf16, #tpu.memory_space<vmem>>, vector<1x256x10xbf16>
    %14 = vector.shape_cast %13 : vector<1x256x10xbf16> to vector<256x10xbf16>
    %cst_9 = arith.constant dense<0.000000e+00> : vector<8x10xf32>
    %15 = tpu.matmul %12, %14, %cst_9 {dimension_numbers = #tpu.dot_dimension_numbers<[1], [0], [0], [1], [0, 0, 1, 1], [], []>} : vector<8x256xbf16>, vector<256x10xbf16>, vector<8x10xf32> -> vector<8x10xf32>
    %16 = vector.extract_strided_slice %10 {offsets = [1, 0, 0], sizes = [1, 8, 256], strides = [1, 1, 1]} : vector<8x8x256xbf16> to vector<1x8x256xbf16>
    %17 = vector.shape_cast %16 : vector<1x8x256xbf16> to vector<8x256xbf16>
    %c1 = arith.constant 1 : index
    %c0_10 = arith.constant 0 : index
    %c0_11 = arith.constant 0 : index
    %18 = vector.load %arg4[%c1, %c0_10, %c0_11] : memref<8x256x10xbf16, #tpu.memory_space<vmem>>, vector<1x256x10xbf16>
    %19 = vector.shape_cast %18 : vector<1x256x10xbf16> to vector<256x10xbf16>
    %cst_12 = arith.constant dense<0.000000e+00> : vector<8x10xf32>
    %20 = tpu.matmul %17, %19, %cst_12 {dimension_numbers = #tpu.dot_dimension_numbers<[1], [0], [0], [1], [0, 0, 1, 1], [], []>} : vector<8x256xbf16>, vector<256x10xbf16>, vector<8x10xf32> -> vector<8x10xf32>
    %21 = arith.addf %15, %20 : vector<8x10xf32>
    %22 = vector.extract_strided_slice %10 {offsets = [2, 0, 0], sizes = [1, 8, 256], strides = [1, 1, 1]} : vector<8x8x256xbf16> to vector<1x8x256xbf16>
    %23 = vector.shape_cast %22 : vector<1x8x256xbf16> to vector<8x256xbf16>
    %c2 = arith.constant 2 : index
    %c0_13 = arith.constant 0 : index
    %c0_14 = arith.constant 0 : index
    %24 = vector.load %arg4[%c2, %c0_13, %c0_14] : memref<8x256x10xbf16, #tpu.memory_space<vmem>>, vector<1x256x10xbf16>
    %25 = vector.shape_cast %24 : vector<1x256x10xbf16> to vector<256x10xbf16>
    %cst_15 = arith.constant dense<0.000000e+00> : vector<8x10xf32>
    %26 = tpu.matmul %23, %25, %cst_15 {dimension_numbers = #tpu.dot_dimension_numbers<[1], [0], [0], [1], [0, 0, 1, 1], [], []>} : vector<8x256xbf16>, vector<256x10xbf16>, vector<8x10xf32> -> vector<8x10xf32>
    %27 = arith.addf %21, %26 : vector<8x10xf32>
    %28 = vector.extract_strided_slice %10 {offsets = [3, 0, 0], sizes = [1, 8, 256], strides = [1, 1, 1]} : vector<8x8x256xbf16> to vector<1x8x256xbf16>
    %29 = vector.shape_cast %28 : vector<1x8x256xbf16> to vector<8x256xbf16>
    %c3 = arith.constant 3 : index
    %c0_16 = arith.constant 0 : index
    %c0_17 = arith.constant 0 : index
    %30 = vector.load %arg4[%c3, %c0_16, %c0_17] : memref<8x256x10xbf16, #tpu.memory_space<vmem>>, vector<1x256x10xbf16>
    %31 = vector.shape_cast %30 : vector<1x256x10xbf16> to vector<256x10xbf16>
    %cst_18 = arith.constant dense<0.000000e+00> : vector<8x10xf32>
    %32 = tpu.matmul %29, %31, %cst_18 {dimension_numbers = #tpu.dot_dimension_numbers<[1], [0], [0], [1], [0, 0, 1, 1], [], []>} : vector<8x256xbf16>, vector<256x10xbf16>, vector<8x10xf32> -> vector<8x10xf32>
    %33 = arith.addf %27, %32 : vector<8x10xf32>
    %34 = vector.extract_strided_slice %10 {offsets = [4, 0, 0], sizes = [1, 8, 256], strides = [1, 1, 1]} : vector<8x8x256xbf16> to vector<1x8x256xbf16>
    %35 = vector.shape_cast %34 : vector<1x8x256xbf16> to vector<8x256xbf16>
    %c4 = arith.constant 4 : index
    %c0_19 = arith.constant 0 : index
    %c0_20 = arith.constant 0 : index
    %36 = vector.load %arg4[%c4, %c0_19, %c0_20] : memref<8x256x10xbf16, #tpu.memory_space<vmem>>, vector<1x256x10xbf16>
    %37 = vector.shape_cast %36 : vector<1x256x10xbf16> to vector<256x10xbf16>
    %cst_21 = arith.constant dense<0.000000e+00> : vector<8x10xf32>
    %38 = tpu.matmul %35, %37, %cst_21 {dimension_numbers = #tpu.dot_dimension_numbers<[1], [0], [0], [1], [0, 0, 1, 1], [], []>} : vector<8x256xbf16>, vector<256x10xbf16>, vector<8x10xf32> -> vector<8x10xf32>
    %39 = arith.addf %33, %38 : vector<8x10xf32>
    %40 = vector.extract_strided_slice %10 {offsets = [5, 0, 0], sizes = [1, 8, 256], strides = [1, 1, 1]} : vector<8x8x256xbf16> to vector<1x8x256xbf16>
    %41 = vector.shape_cast %40 : vector<1x8x256xbf16> to vector<8x256xbf16>
    %c5 = arith.constant 5 : index
    %c0_22 = arith.constant 0 : index
    %c0_23 = arith.constant 0 : index
    %42 = vector.load %arg4[%c5, %c0_22, %c0_23] : memref<8x256x10xbf16, #tpu.memory_space<vmem>>, vector<1x256x10xbf16>
    %43 = vector.shape_cast %42 : vector<1x256x10xbf16> to vector<256x10xbf16>
    %cst_24 = arith.constant dense<0.000000e+00> : vector<8x10xf32>
    %44 = tpu.matmul %41, %43, %cst_24 {dimension_numbers = #tpu.dot_dimension_numbers<[1], [0], [0], [1], [0, 0, 1, 1], [], []>} : vector<8x256xbf16>, vector<256x10xbf16>, vector<8x10xf32> -> vector<8x10xf32>
    %45 = arith.addf %39, %44 : vector<8x10xf32>
    %46 = vector.extract_strided_slice %10 {offsets = [6, 0, 0], sizes = [1, 8, 256], strides = [1, 1, 1]} : vector<8x8x256xbf16> to vector<1x8x256xbf16>
    %47 = vector.shape_cast %46 : vector<1x8x256xbf16> to vector<8x256xbf16>
    %c6 = arith.constant 6 : index
    %c0_25 = arith.constant 0 : index
    %c0_26 = arith.constant 0 : index
    %48 = vector.load %arg4[%c6, %c0_25, %c0_26] : memref<8x256x10xbf16, #tpu.memory_space<vmem>>, vector<1x256x10xbf16>
    %49 = vector.shape_cast %48 : vector<1x256x10xbf16> to vector<256x10xbf16>
    %cst_27 = arith.constant dense<0.000000e+00> : vector<8x10xf32>
    %50 = tpu.matmul %47, %49, %cst_27 {dimension_numbers = #tpu.dot_dimension_numbers<[1], [0], [0], [1], [0, 0, 1, 1], [], []>} : vector<8x256xbf16>, vector<256x10xbf16>, vector<8x10xf32> -> vector<8x10xf32>
    %51 = arith.addf %45, %50 : vector<8x10xf32>
    %52 = vector.extract_strided_slice %10 {offsets = [7, 0, 0], sizes = [1, 8, 256], strides = [1, 1, 1]} : vector<8x8x256xbf16> to vector<1x8x256xbf16>
    %53 = vector.shape_cast %52 : vector<1x8x256xbf16> to vector<8x256xbf16>
    %c7 = arith.constant 7 : index
    %c0_28 = arith.constant 0 : index
    %c0_29 = arith.constant 0 : index
    %54 = vector.load %arg4[%c7, %c0_28, %c0_29] : memref<8x256x10xbf16, #tpu.memory_space<vmem>>, vector<1x256x10xbf16>
    %55 = vector.shape_cast %54 : vector<1x256x10xbf16> to vector<256x10xbf16>
    %cst_30 = arith.constant dense<0.000000e+00> : vector<8x10xf32>
    %56 = tpu.matmul %53, %55, %cst_30 {dimension_numbers = #tpu.dot_dimension_numbers<[1], [0], [0], [1], [0, 0, 1, 1], [], []>} : vector<8x256xbf16>, vector<256x10xbf16>, vector<8x10xf32> -> vector<8x10xf32>
    %57 = arith.addf %51, %56 : vector<8x10xf32>
    %c0_31 = arith.constant 0 : index
    %c0_32 = arith.constant 0 : index
    %58 = vector.load %arg5[%c0_31, %c0_32] : memref<1x10xf32, #tpu.memory_space<vmem>>, vector<1x10xf32>
    %59 = vector.broadcast %58 : vector<1x10xf32> to vector<8x10xf32>
    %60 = arith.cmpf oge, %57, %59 : vector<8x10xf32>
    %61 = arith.extui %60 : vector<8x10xi1> to vector<8x10xi32>
    %62 = arith.sitofp %61 : vector<8x10xi32> to vector<8x10xf32>
    %c0_33 = arith.constant 0 : index
    %c0_34 = arith.constant 0 : index
    %63 = vector.load %arg6[%c0_33, %c0_34] : memref<8x10xf32, #tpu.memory_space<vmem>>, vector<8x10xf32>
    tpu.vector_store %arg6[%c0_33, %c0_34], %62 {strides = array<i32>} : memref<8x10xf32, #tpu.memory_space<vmem>>, vector<8x10xf32>,
    return
  }
  func.func @transform_0(%arg0: i32) -> (i32, i32, i32) {
    %c0_i32 = arith.constant 0 : i32
    %c0_i32_0 = arith.constant 0 : i32
    %c0_i32_1 = arith.constant 0 : i32
    return %arg0, %c0_i32, %c0_i32_0 : i32, i32, i32
  }
  func.func @transform_1(%arg0: i32) -> (i32, i32) {
    %c0_i32 = arith.constant 0 : i32
    %c0_i32_0 = arith.constant 0 : i32
    %c0_i32_1 = arith.constant 0 : i32
    return %c0_i32, %c0_i32_0 : i32, i32
  }
  func.func @transform_2(%arg0: i32) -> (i32, i32) {
    %c0_i32 = arith.constant 0 : i32
    %c0_i32_0 = arith.constant 0 : i32
    %c0_i32_1 = arith.constant 0 : i32
    return %c0_i32, %c0_i32_0 : i32, i32
  }
  func.func @transform_3(%arg0: i32) -> (i32, i32, i32) {
    %c0_i32 = arith.constant 0 : i32
    %c0_i32_0 = arith.constant 0 : i32
    %c0_i32_1 = arith.constant 0 : i32
    %c0_i32_2 = arith.constant 0 : i32
    return %c0_i32, %c0_i32_0, %c0_i32_1 : i32, i32, i32
  }
  func.func @transform_4(%arg0: i32) -> (i32, i32) {
    %c0_i32 = arith.constant 0 : i32
    %c0_i32_0 = arith.constant 0 : i32
    %c0_i32_1 = arith.constant 0 : i32
    return %c0_i32, %c0_i32_0 : i32, i32
  }
  func.func @transform_5(%arg0: i32) -> (i32, i32) {
    %c0_i32 = arith.constant 0 : i32
    %c0_i32_0 = arith.constant 0 : i32
    return %arg0, %c0_i32 : i32, i32
  }
}

</mosaic_0001>

<llo_original>
// kernel: net_forward.1
$region0: #{net_forward.1}
  #allocation0 [shape = 'u32[]', space=smem, size = 0x4, offset = 0x4, fixed_abs, tag = 'smem constant byte address 0x4 - core index']
  #allocation1 [shape = 'u32[72,128]{1,0:T(1,128)}', space=vmem, size = 0x9000, scoped, tag = 'internal scratch']
  %s0 = inlined_call_operand.vmem [shape: bf16[2,18,2048], index: 0, kind: input, shape index: {}]
  %s1 = inlined_call_operand.vmem [shape: bf16[8,18], index: 1, kind: input, shape index: {}]
  %s2 = inlined_call_operand.vmem [shape: f32[8,1], index: 2, kind: input, shape index: {}]
  %s3 = inlined_call_operand.vmem [shape: bf16[8,256,10], index: 3, kind: input, shape index: {}]
  %s4 = inlined_call_operand.vmem [shape: f32[1,10], index: 4, kind: input, shape index: {}]
  %s5 = inlined_call_operand.hbm [shape: f32[16,10], index: 5, kind: output, shape index: {}]
  %s6 = sld [smem:[#allocation0]]
  $region53: #{net_forward.1} parent=0
    _
  %s8 = ssub.s32 1, %s6
  %s9 = scalar_select 0, %s8, %s6
  $region1: #{net_forward.1} parent=0
    #allocation2 [shape = 'u8[8192]{0}', space=vmem, size = 0x2000, scoped, tag = 'output window, operand 0']
    #allocation3 [shape = 's32[2]{0}', space=sflag, size = 0x8, scoped, tag = 'scoped memory for net_forward.1']
    %10 = vsyncpa [#allocation3], 0
    %s11 = scalar_lea.sflag [#allocation3], 1
    %12 = vsyncpa %s11, 0
    loop: start=0, step=1, limit=4
    $region2: #{net_forward.1} parent=1 // loop_pre_header
      _
    $region3: #{net_forward.1} parent=1 // loop_header
      %s14 = sphi 0, %s18
      %p15 = scmp.ge.s32.totalorder %s14, 4
      %s24 = sphi 0, %s26
      %s27 = sphi 0, %s24
      %s28 = sphi 0, %s27
      %s44 = sphi 0, %s28
      %s48 = sphi 0, %s48
      %s50 = sphi 0, %s48
      %s51 = sphi 0, %s50
      %s65 = sphi 0, %s51
      %s69 = sphi 0, %s69
      %s71 = sphi 0, %s69
      %s72 = sphi 0, %s71
      %s86 = sphi 0, %s72
      %s90 = sphi 0, %s90
      %s92 = sphi 0, %s90
      %s93 = sphi 0, %s92
      %s107 = sphi 0, %s93
      %s111 = sphi 0, %s111
      %s113 = sphi 0, %s111
      %s114 = sphi 0, %s113
      %s128 = sphi 0, %s114
      %s134 = sphi 0, %s136
      %s137 = sphi 0, %s134
      %s138 = sphi 0, %s137
      %s154 = sphi 0, %s138
    $region4: #{net_forward.1} parent=1 // loop_header_branch
      %17 = sbr.rel (%p15) target = $region8
    $region5: #{net_forward.1} parent=1 // loop_body
      %s19 = ssub.s32 %s14, 1
      %s20 = ssub.s32 %s14, 2
      %s21 = sadd.s32 %s14, 1
      %s22 = ssub.s32 %s14, %s21
      %p23 = scmp.eq.s32.totalorder %s22, 0
      %s25 = sadd.s32 %s24, 1
      %s26 = scalar_select %p23, %s24, %s25
      %p29 = pneg %p23
      %p30 = scmp.eq.s32.totalorder %s14, 1
      %p31 = por %p29, %p30
      %p32 = scmp.ne.s32.totalorder %s24, %s27
      %p33 = scmp.eq.s32.totalorder %s14, 0
      %p34 = por %p32, %p33
      %p35 = scmp.ne.s32.totalorder %s24, %s27
      %p36 = scmp.eq.s32.totalorder %s19, 1
      %p37 = por %p35, %p36
      %p38 = scmp.ne.s32.totalorder %s27, %s28
      %p39 = scmp.eq.s32.totalorder %s19, 0
      %p40 = por %p38, %p39
      %p41 = scmp.ne.s32.totalorder %s27, %s28
      %p42 = scmp.eq.s32.totalorder %s20, 1
      %p43 = por %p41, %p42
      %p45 = scmp.ne.s32.totalorder %s28, %s44
      %p46 = scmp.eq.s32.totalorder %s20, 0
      %p47 = por %p45, %p46
      %s49 = sadd.s32 %s48, 1
      %p52 = scmp.eq.s32.totalorder %s14, 1
      %p53 = scmp.ne.s32.totalorder %s48, %s50
      %p54 = scmp.eq.s32.totalorder %s14, 0
      %p55 = por %p53, %p54
      %p56 = scmp.ne.s32.totalorder %s48, %s50
      %p57 = scmp.eq.s32.totalorder %s19, 1
      %p58 = por %p56, %p57
      %p59 = scmp.ne.s32.totalorder %s50, %s51
      %p60 = scmp.eq.s32.totalorder %s19, 0
      %p61 = por %p59, %p60
      %p62 = scmp.ne.s32.totalorder %s50, %s51
      %p63 = scmp.eq.s32.totalorder %s20, 1
      %p64 = por %p62, %p63
      %p66 = scmp.ne.s32.totalorder %s51, %s65
      %p67 = scmp.eq.s32.totalorder %s20, 0
      %p68 = por %p66, %p67
      %s70 = sadd.s32 %s69, 1
      %p73 = scmp.eq.s32.totalorder %s14, 1
      %p74 = scmp.ne.s32.totalorder %s69, %s71
      %p75 = scmp.eq.s32.totalorder %s14, 0
      %p76 = por %p74, %p75
      %p77 = scmp.ne.s32.totalorder %s69, %s71
      %p78 = scmp.eq.s32.totalorder %s19, 1
      %p79 = por %p77, %p78
      %p80 = scmp.ne.s32.totalorder %s71, %s72
      %p81 = scmp.eq.s32.totalorder %s19, 0
      %p82 = por %p80, %p81
      %p83 = scmp.ne.s32.totalorder %s71, %s72
      %p84 = scmp.eq.s32.totalorder %s20, 1
      %p85 = por %p83, %p84
      %p87 = scmp.ne.s32.totalorder %s72, %s86
      %p88 = scmp.eq.s32.totalorder %s20, 0
      %p89 = por %p87, %p88
      %s91 = sadd.s32 %s90, 1
      %p94 = scmp.eq.s32.totalorder %s14, 1
      %p95 = scmp.ne.s32.totalorder %s90, %s92
      %p96 = scmp.eq.s32.totalorder %s14, 0
      %p97 = por %p95, %p96
      %p98 = scmp.ne.s32.totalorder %s90, %s92
      %p99 = scmp.eq.s32.totalorder %s19, 1
      %p100 = por %p98, %p99
      %p101 = scmp.ne.s32.totalorder %s92, %s93
      %p102 = scmp.eq.s32.totalorder %s19, 0
      %p103 = por %p101, %p102
      %p104 = scmp.ne.s32.totalorder %s92, %s93
      %p105 = scmp.eq.s32.totalorder %s20, 1
      %p106 = por %p104, %p105
      %p108 = scmp.ne.s32.totalorder %s93, %s107
      %p109 = scmp.eq.s32.totalorder %s20, 0
      %p110 = por %p108, %p109
      %s112 = sadd.s32 %s111, 1
      %p115 = scmp.eq.s32.totalorder %s14, 1
      %p116 = scmp.ne.s32.totalorder %s111, %s113
      %p117 = scmp.eq.s32.totalorder %s14, 0
      %p118 = por %p116, %p117
      %p119 = scmp.ne.s32.totalorder %s111, %s113
      %p120 = scmp.eq.s32.totalorder %s19, 1
      %p121 = por %p119, %p120
      %p122 = scmp.ne.s32.totalorder %s113, %s114
      %p123 = scmp.eq.s32.totalorder %s19, 0
      %p124 = por %p122, %p123
      %p125 = scmp.ne.s32.totalorder %s113, %s114
      %p126 = scmp.eq.s32.totalorder %s20, 1
      %p127 = por %p125, %p126
      %p129 = scmp.ne.s32.totalorder %s114, %s128
      %p130 = scmp.eq.s32.totalorder %s20, 0
      %p131 = por %p129, %p130
      %s132 = ssub.s32 %s14, %s21
      %p133 = scmp.eq.s32.totalorder %s132, 0
      %s135 = sadd.s32 %s134, 1
      %s136 = scalar_select %p133, %s134, %s135
      %p139 = pneg %p133
      %p140 = scmp.eq.s32.totalorder %s14, 1
      %p141 = por %p139, %p140
      %p142 = scmp.ne.s32.totalorder %s134, %s137
      %p143 = scmp.eq.s32.totalorder %s14, 0
      %p144 = por %p142, %p143
      %p145 = scmp.ne.s32.totalorder %s134, %s137
      %p146 = scmp.eq.s32.totalorder %s19, 1
      %p147 = por %p145, %p146
      %p148 = scmp.ne.s32.totalorder %s137, %s138
      %p149 = scmp.eq.s32.totalorder %s19, 0
      %p150 = por %p148, %p149
      %p151 = scmp.ne.s32.totalorder %s137, %s138
      %p152 = scmp.eq.s32.totalorder %s20, 1
      %p153 = por %p151, %p152
      %p155 = scmp.ne.s32.totalorder %s138, %s154
      %p156 = scmp.eq.s32.totalorder %s20, 0
      %p157 = por %p155, %p156
      %p158 = scmp.le.s32.totalorder 1, %s14
      %p159 = scmp.lt.s32.totalorder %s14, 3
      %p160 = pnand %p158, %p159
      %p161 = pneg %p160
      // Predicated region
      $region9: #{net_forward.1} parent=5 // pred_check
        _
      $region10: #{net_forward.1} parent=5 // pred_check_branch
        %163 = sbr.rel (%p160) target = $region12
      $region11: #{net_forward.1} parent=5 // pred_region
        %s164 = ssub.s32 %s14, 1
        // Predicated region
        $region13: #{net_forward.1} parent=11 // pred_check
          %p165 = pneg %p61
        $region14: #{net_forward.1} parent=11 // pred_check_branch
          %167 = sbr.rel (%p165) target = $region16
        $region15: #{net_forward.1} parent=11 // pred_region
          _
        $region16: #{net_forward.1} parent=11 // pred_fallthru
          _
        // Predicated region
        $region17: #{net_forward.1} parent=11 // pred_check
          %p168 = pneg %p82
        $region18: #{net_forward.1} parent=11 // pred_check_branch
          %170 = sbr.rel (%p168) target = $region20
        $region19: #{net_forward.1} parent=11 // pred_region
          _
        $region20: #{net_forward.1} parent=11 // pred_fallthru
          _
        // Predicated region
        $region21: #{net_forward.1} parent=11 // pred_check
          %p171 = pneg %p103
        $region22: #{net_forward.1} parent=11 // pred_check_branch
          %173 = sbr.rel (%p171) target = $region24
        $region23: #{net_forward.1} parent=11 // pred_region
          _
        $region24: #{net_forward.1} parent=11 // pred_fallthru
          _
        // Predicated region
        $region25: #{net_forward.1} parent=11 // pred_check
          %p174 = pneg %p124
        $region26: #{net_forward.1} parent=11 // pred_check_branch
          %176 = sbr.rel (%p174) target = $region28
        $region27: #{net_forward.1} parent=11 // pred_region
          _
        $region28: #{net_forward.1} parent=11 // pred_fallthru
          _
      $region12: #{net_forward.1} parent=5 // pred_fallthru
        _
      %p177 = scmp.lt.s32.totalorder %s14, 2
      // Predicated region
      $region29: #{net_forward.1} parent=5 // pred_check
        %p178 = pneg %p177
      $region30: #{net_forward.1} parent=5 // pred_check_branch
        %180 = sbr.rel (%p178) target = $region32
      $region31: #{net_forward.1} parent=5 // pred_region
        // Predicated region
        $region33: #{net_forward.1} parent=31 // pred_check
          %p181 = pneg %p34
        $region34: #{net_forward.1} parent=31 // pred_check_branch
          %183 = sbr.rel (%p181) target = $region36
        $region35: #{net_forward.1} parent=31 // pred_region
          %p184 = scmp.lt.s32.totalorder %s14, 1
          %s185 = scalar_select %p184, %s14, 1
          %s186 = smul.addr %s185, 48
          %s187 = smul.addr %s186, 4
          %s188 = scalar_lea.vmem %s0, %s187
        $region36: #{net_forward.1} parent=31 // pred_fallthru
          _
      $region32: #{net_forward.1} parent=5 // pred_fallthru
        _
      %p189 = scmp.le.s32.totalorder 1, %s14
      %p190 = scmp.lt.s32.totalorder %s14, 3
      %p191 = pnand %p189, %p190
      %p192 = pneg %p191
      // Predicated region
      $region37: #{net_forward.1} parent=5 // pred_check
        _
      $region38: #{net_forward.1} parent=5 // pred_check_branch
        %194 = sbr.rel (%p191) target = $region40
      $region39: #{net_forward.1} parent=5 // pred_region
        %s195 = ssub.s32 %s14, 1
        %p196 = scmp.lt.s32.totalorder %s19, 1
        %s197 = scalar_select %p196, %s19, 1
        %s198 = smul.addr %s197, 48
        %s199 = smul.addr %s198, 4
        %s200 = scalar_lea.vmem %s0, %s199
        %p201 = pneg %p40
        %p202 = pneg %p37
        %p203 = pneg %p61
        %p204 = pneg %p58
        %p205 = pneg %p82
        %p206 = pneg %p79
        %p207 = pneg %p103
        %p208 = pneg %p100
        %p209 = pneg %p124
        %p210 = pneg %p121
        %p211 = pneg %p150
        %p212 = pneg %p147
        %s213 = sand.u32 %s137, 1
        %s214 = scalar_lea.sflag [#allocation3], %s213
        %s215 = sand.u32 %s137, 1
        %s216 = smul.addr %s215, 8
        %s217 = scalar_lea.vmem [#allocation2], %s216
        %p218 = scmp.lt.s32.totalorder %s19, 1
        %s219 = scalar_select %p218, %s19, 1
        %s220 = smul.addr %s219, 48
        %s221 = smul.addr %s220, 4
        %s222 = scalar_lea.vmem %s0, %s221
        %v224 = vld [vmem:[%s1] sm:$0xf]
        %v225 = vld [vmem:[%s222] sm:$0xff]
        %v226 = vld [vmem:[%s222 + $0x8] sm:$0xff]
        %v227 = vld [vmem:[%s222 + $0x10] sm:$0xff]
        %v228 = vld [vmem:[%s222 + $0x18] sm:$0xff]
        %v229 = vld [vmem:[%s222 + $0x20] sm:$0xff]
        %v230 = vld [vmem:[%s222 + $0x28] sm:$0xff]
        %v231 = vld [vmem:[%s222 + $0x30] sm:$0xff]
        %v232 = vld [vmem:[%s222 + $0x38] sm:$0xff]
        %v233 = vld [vmem:[%s222 + $0x40] sm:$0xff]
        %v234 = vld [vmem:[%s222 + $0x48] sm:$0xff]
        %v235 = vld [vmem:[%s222 + $0x50] sm:$0xff]
        %v236 = vld [vmem:[%s222 + $0x58] sm:$0xff]
        %v237 = vld [vmem:[%s222 + $0x60] sm:$0xff]
        %v238 = vld [vmem:[%s222 + $0x68] sm:$0xff]
        %v239 = vld [vmem:[%s222 + $0x70] sm:$0xff]
        %v240 = vld [vmem:[%s222 + $0x78] sm:$0xff]
        %v241 = vld [vmem:[%s222 + $0x80] sm:$0x11]
        %v242 = vld [vmem:[%s222 + $0x88] sm:$0x11]
        %v243 = vld [vmem:[%s222 + $0x90] sm:$0x11]
        %v244 = vld [vmem:[%s222 + $0x98] sm:$0x11]
        %v245 = vld [vmem:[%s222 + $0xa0] sm:$0x11]
        %v246 = vld [vmem:[%s222 + $0xa8] sm:$0x11]
        %v247 = vld [vmem:[%s222 + $0xb0] sm:$0x11]
        %v248 = vld [vmem:[%s222 + $0xb8] sm:$0x11]
        %v273 = vunpack.c.l.b16 %v225
        %v274 = vunpack.c.h.b16 %v225
        %v275 = vunpack.c.l.b16 %v226
        %v276 = vunpack.c.h.b16 %v226
        %v277 = vunpack.c.l.b16 %v227
        %v278 = vunpack.c.h.b16 %v227
        %v279 = vunpack.c.l.b16 %v228
        %v280 = vunpack.c.h.b16 %v228
        %v281 = vunpack.c.l.b16 %v229
        %v282 = vunpack.c.h.b16 %v229
        %v283 = vunpack.c.l.b16 %v230
        %v284 = vunpack.c.h.b16 %v230
        %v285 = vunpack.c.l.b16 %v231
        %v286 = vunpack.c.h.b16 %v231
        %v287 = vunpack.c.l.b16 %v232
        %v288 = vunpack.c.h.b16 %v232
        %v289 = vunpack.c.l.b16 %v233
        %v290 = vunpack.c.h.b16 %v233
        %v291 = vunpack.c.l.b16 %v234
        %v292 = vunpack.c.h.b16 %v234
        %v293 = vunpack.c.l.b16 %v235
        %v294 = vunpack.c.h.b16 %v235
        %v295 = vunpack.c.l.b16 %v236
        %v296 = vunpack.c.h.b16 %v236
        %v297 = vunpack.c.l.b16 %v237
        %v298 = vunpack.c.h.b16 %v237
        %v299 = vunpack.c.l.b16 %v238
        %v300 = vunpack.c.h.b16 %v238
        %v301 = vunpack.c.l.b16 %v239
        %v302 = vunpack.c.h.b16 %v239
        %v303 = vunpack.c.l.b16 %v240
        %v304 = vunpack.c.h.b16 %v240
        %v305 = vunpack.c.l.b16 %v241
        %v306 = vunpack.c.h.b16 %v241
        %v307 = vunpack.c.l.b16 %v242
        %v308 = vunpack.c.h.b16 %v242
        %v309 = vunpack.c.l.b16 %v243
        %v310 = vunpack.c.h.b16 %v243
        %v311 = vunpack.c.l.b16 %v244
        %v312 = vunpack.c.h.b16 %v244
        %v313 = vunpack.c.l.b16 %v245
        %v314 = vunpack.c.h.b16 %v245
        %v315 = vunpack.c.l.b16 %v246
        %v316 = vunpack.c.h.b16 %v246
        %v317 = vunpack.c.l.b16 %v247
        %v318 = vunpack.c.h.b16 %v247
        %v319 = vunpack.c.l.b16 %v248
        %v320 = vunpack.c.h.b16 %v248
        %v321 = vpack.c.b16 %v289, %v273
        %v322 = vpack.c.b16 %v290, %v274
        %v323 = vpack.c.b16 %v291, %v275
        %v324 = vpack.c.b16 %v292, %v276
        %v325 = vpack.c.b16 %v293, %v277
        %v326 = vpack.c.b16 %v294, %v278
        %v327 = vpack.c.b16 %v295, %v279
        %v328 = vpack.c.b16 %v296, %v280
        %v329 = vpack.c.b16 %v297, %v281
        %v330 = vpack.c.b16 %v298, %v282
        %v331 = vpack.c.b16 %v299, %v283
        %v332 = vpack.c.b16 %v300, %v284
        %v333 = vpack.c.b16 %v301, %v285
        %v334 = vpack.c.b16 %v302, %v286
        %v335 = vpack.c.b16 %v303, %v287
        %v336 = vpack.c.b16 %v304, %v288
        %v337 = vpack.c.b16 %v305, %v305
        %v338 = vpack.c.b16 %v306, %v306
        %v339 = vpack.c.b16 %v307, %v307
        %v340 = vpack.c.b16 %v308, %v308
        %v341 = vpack.c.b16 %v309, %v309
        %v342 = vpack.c.b16 %v310, %v310
        %v343 = vpack.c.b16 %v311, %v311
        %v344 = vpack.c.b16 %v312, %v312
        %v345 = vpack.c.b16 %v313, %v313
        %v346 = vpack.c.b16 %v314, %v314
        %v347 = vpack.c.b16 %v315, %v315
        %v348 = vpack.c.b16 %v316, %v316
        %v349 = vpack.c.b16 %v317, %v317
        %v350 = vpack.c.b16 %v318, %v318
        %v351 = vpack.c.b16 %v319, %v319
        %v352 = vpack.c.b16 %v320, %v320
        %vm369 = vcmask 146432
        %v371 = vsel %vm369, %v224, 0
        %vm373 = vcmask 1040384
        %v375 = vsel %vm373, %v337, 0
        %v378 = vsel %vm373, %v338, 0
        %v381 = vsel %vm373, %v339, 0
        %v384 = vsel %vm373, %v340, 0
        %v387 = vsel %vm373, %v341, 0
        %v390 = vsel %vm373, %v342, 0
        %v393 = vsel %vm373, %v343, 0
        %v396 = vsel %vm373, %v344, 0
        %v399 = vsel %vm373, %v345, 0
        %v402 = vsel %vm373, %v346, 0
        %v405 = vsel %vm373, %v347, 0
        %v408 = vsel %vm373, %v348, 0
        %v411 = vsel %vm373, %v349, 0
        %v414 = vsel %vm373, %v350, 0
        %v417 = vsel %vm373, %v351, 0
        %v420 = vsel %vm373, %v352, 0
        %422 = vmatpush.bf16.msra.mxu0 0
        %423 = vmatpush.bf16.msra.mxu0 0
        %424 = vmatpush.bf16.msra.mxu0 0
        %425 = vmatpush.bf16.msra.mxu0 0
        %426 = vmatpush.bf16.msra.mxu0 0
        %427 = vmatpush.bf16.msra.mxu0 0
        %428 = vmatpush.bf16.msra.mxu0 %v375
        %429 = vmatpush.bf16.msra.mxu0 %v321
        %430 = vmatmul.bf16.gmra.mxu0 %v371
        %v431 = vpop.f32.mrf.mxu0
        %v432 = vadd.f32 0.0, %v431
        %v433 = vpop.f32.mrf.mxu0
        %434 = vdwg.mxu0
        %435 = vmatpush.bf16.msra.mxu0 0
        %436 = vmatpush.bf16.msra.mxu0 0
        %437 = vmatpush.bf16.msra.mxu0 0
        %438 = vmatpush.bf16.msra.mxu0 0
        %439 = vmatpush.bf16.msra.mxu0 0
        %440 = vmatpush.bf16.msra.mxu0 0
        %441 = vmatpush.bf16.msra.mxu0 %v378
        %442 = vmatpush.bf16.msra.mxu0 %v322
        %443 = vmatmul.bf16.gmra.mxu0 %v371
        %v444 = vpop.f32.mrf.mxu0
        %v445 = vadd.f32 0.0, %v444
        %v446 = vpop.f32.mrf.mxu0
        %447 = vdwg.mxu0
        %448 = vmatpush.bf16.msra.mxu0 0
        %449 = vmatpush.bf16.msra.mxu0 0
        %450 = vmatpush.bf16.msra.mxu0 0
        %451 = vmatpush.bf16.msra.mxu0 0
        %452 = vmatpush.bf16.msra.mxu0 0
        %453 = vmatpush.bf16.msra.mxu0 0
        %454 = vmatpush.bf16.msra.mxu0 %v381
        %455 = vmatpush.bf16.msra.mxu0 %v323
        %456 = vmatmul.bf16.gmra.mxu0 %v371
        %v457 = vpop.f32.mrf.mxu0
        %v458 = vadd.f32 0.0, %v457
        %v459 = vpop.f32.mrf.mxu0
        %460 = vdwg.mxu0
        %461 = vmatpush.bf16.msra.mxu0 0
        %462 = vmatpush.bf16.msra.mxu0 0
        %463 = vmatpush.bf16.msra.mxu0 0
        %464 = vmatpush.bf16.msra.mxu0 0
        %465 = vmatpush.bf16.msra.mxu0 0
        %466 = vmatpush.bf16.msra.mxu0 0
        %467 = vmatpush.bf16.msra.mxu0 %v384
        %468 = vmatpush.bf16.msra.mxu0 %v324
        %469 = vmatmul.bf16.gmra.mxu0 %v371
        %v470 = vpop.f32.mrf.mxu0
        %v471 = vadd.f32 0.0, %v470
        %v472 = vpop.f32.mrf.mxu0
        %473 = vdwg.mxu0
        %474 = vmatpush.bf16.msra.mxu0 0
        %475 = vmatpush.bf16.msra.mxu0 0
        %476 = vmatpush.bf16.msra.mxu0 0
        %477 = vmatpush.bf16.msra.mxu0 0
        %478 = vmatpush.bf16.msra.mxu0 0
        %479 = vmatpush.bf16.msra.mxu0 0
        %480 = vmatpush.bf16.msra.mxu0 %v387
        %481 = vmatpush.bf16.msra.mxu0 %v325
        %482 = vmatmul.bf16.gmra.mxu0 %v371
        %v483 = vpop.f32.mrf.mxu0
        %v484 = vadd.f32 0.0, %v483
        %v485 = vpop.f32.mrf.mxu0
        %486 = vdwg.mxu0
        %487 = vmatpush.bf16.msra.mxu0 0
        %488 = vmatpush.bf16.msra.mxu0 0
        %489 = vmatpush.bf16.msra.mxu0 0
        %490 = vmatpush.bf16.msra.mxu0 0
        %491 = vmatpush.bf16.msra.mxu0 0
        %492 = vmatpush.bf16.msra.mxu0 0
        %493 = vmatpush.bf16.msra.mxu0 %v390
        %494 = vmatpush.bf16.msra.mxu0 %v326
        %495 = vmatmul.bf16.gmra.mxu0 %v371
        %v496 = vpop.f32.mrf.mxu0
        %v497 = vadd.f32 0.0, %v496
        %v498 = vpop.f32.mrf.mxu0
        %499 = vdwg.mxu0
        %500 = vmatpush.bf16.msra.mxu0 0
        %501 = vmatpush.bf16.msra.mxu0 0
        %502 = vmatpush.bf16.msra.mxu0 0
        %503 = vmatpush.bf16.msra.mxu0 0
        %504 = vmatpush.bf16.msra.mxu0 0
        %505 = vmatpush.bf16.msra.mxu0 0
        %506 = vmatpush.bf16.msra.mxu0 %v393
        %507 = vmatpush.bf16.msra.mxu0 %v327
        %508 = vmatmul.bf16.gmra.mxu0 %v371
        %v509 = vpop.f32.mrf.mxu0
        %v510 = vadd.f32 0.0, %v509
        %v511 = vpop.f32.mrf.mxu0
        %512 = vdwg.mxu0
        %513 = vmatpush.bf16.msra.mxu0 0
        %514 = vmatpush.bf16.msra.mxu0 0
        %515 = vmatpush.bf16.msra.mxu0 0
        %516 = vmatpush.bf16.msra.mxu0 0
        %517 = vmatpush.bf16.msra.mxu0 0
        %518 = vmatpush.bf16.msra.mxu0 0
        %519 = vmatpush.bf16.msra.mxu0 %v396
        %520 = vmatpush.bf16.msra.mxu0 %v328
        %521 = vmatmul.bf16.gmra.mxu0 %v371
        %v522 = vpop.f32.mrf.mxu0
        %v523 = vadd.f32 0.0, %v522
        %v524 = vpop.f32.mrf.mxu0
        %525 = vdwg.mxu0
        %526 = vmatpush.bf16.msra.mxu0 0
        %527 = vmatpush.bf16.msra.mxu0 0
        %528 = vmatpush.bf16.msra.mxu0 0
        %529 = vmatpush.bf16.msra.mxu0 0
        %530 = vmatpush.bf16.msra.mxu0 0
        %531 = vmatpush.bf16.msra.mxu0 0
        %532 = vmatpush.bf16.msra.mxu0 %v399
        %533 = vmatpush.bf16.msra.mxu0 %v329
        %534 = vmatmul.bf16.gmra.mxu0 %v371
        %v535 = vpop.f32.mrf.mxu0
        %v536 = vadd.f32 0.0, %v535
        %v537 = vpop.f32.mrf.mxu0
        %538 = vdwg.mxu0
        %539 = vmatpush.bf16.msra.mxu0 0
        %540 = vmatpush.bf16.msra.mxu0 0
        %541 = vmatpush.bf16.msra.mxu0 0
        %542 = vmatpush.bf16.msra.mxu0 0
        %543 = vmatpush.bf16.msra.mxu0 0
        %544 = vmatpush.bf16.msra.mxu0 0
        %545 = vmatpush.bf16.msra.mxu0 %v402
        %546 = vmatpush.bf16.msra.mxu0 %v330
        %547 = vmatmul.bf16.gmra.mxu0 %v371
        %v548 = vpop.f32.mrf.mxu0
        %v549 = vadd.f32 0.0, %v548
        %v550 = vpop.f32.mrf.mxu0
        %551 = vdwg.mxu0
        %552 = vmatpush.bf16.msra.mxu0 0
        %553 = vmatpush.bf16.msra.mxu0 0
        %554 = vmatpush.bf16.msra.mxu0 0
        %555 = vmatpush.bf16.msra.mxu0 0
        %556 = vmatpush.bf16.msra.mxu0 0
        %557 = vmatpush.bf16.msra.mxu0 0
        %558 = vmatpush.bf16.msra.mxu0 %v405
        %559 = vmatpush.bf16.msra.mxu0 %v331
        %560 = vmatmul.bf16.gmra.mxu0 %v371
        %v561 = vpop.f32.mrf.mxu0
        %v562 = vadd.f32 0.0, %v561
        %v563 = vpop.f32.mrf.mxu0
        %564 = vdwg.mxu0
        %565 = vmatpush.bf16.msra.mxu0 0
        %566 = vmatpush.bf16.msra.mxu0 0
        %567 = vmatpush.bf16.msra.mxu0 0
        %568 = vmatpush.bf16.msra.mxu0 0
        %569 = vmatpush.bf16.msra.mxu0 0
        %570 = vmatpush.bf16.msra.mxu0 0
        %571 = vmatpush.bf16.msra.mxu0 %v408
        %572 = vmatpush.bf16.msra.mxu0 %v332
        %573 = vmatmul.bf16.gmra.mxu0 %v371
        %v574 = vpop.f32.mrf.mxu0
        %v575 = vadd.f32 0.0, %v574
        %v576 = vpop.f32.mrf.mxu0
        %577 = vdwg.mxu0
        %578 = vmatpush.bf16.msra.mxu0 0
        %579 = vmatpush.bf16.msra.mxu0 0
        %580 = vmatpush.bf16.msra.mxu0 0
        %581 = vmatpush.bf16.msra.mxu0 0
        %582 = vmatpush.bf16.msra.mxu0 0
        %583 = vmatpush.bf16.msra.mxu0 0
        %584 = vmatpush.bf16.msra.mxu0 %v411
        %585 = vmatpush.bf16.msra.mxu0 %v333
        %586 = vmatmul.bf16.gmra.mxu0 %v371
        %v587 = vpop.f32.mrf.mxu0
        %v588 = vadd.f32 0.0, %v587
        %v589 = vpop.f32.mrf.mxu0
        %590 = vdwg.mxu0
        %591 = vmatpush.bf16.msra.mxu0 0
        %592 = vmatpush.bf16.msra.mxu0 0
        %593 = vmatpush.bf16.msra.mxu0 0
        %594 = vmatpush.bf16.msra.mxu0 0
        %595 = vmatpush.bf16.msra.mxu0 0
        %596 = vmatpush.bf16.msra.mxu0 0
        %597 = vmatpush.bf16.msra.mxu0 %v414
        %598 = vmatpush.bf16.msra.mxu0 %v334
        %599 = vmatmul.bf16.gmra.mxu0 %v371
        %v600 = vpop.f32.mrf.mxu0
        %v601 = vadd.f32 0.0, %v600
        %v602 = vpop.f32.mrf.mxu0
        %603 = vdwg.mxu0
        %604 = vmatpush.bf16.msra.mxu0 0
        %605 = vmatpush.bf16.msra.mxu0 0
        %606 = vmatpush.bf16.msra.mxu0 0
        %607 = vmatpush.bf16.msra.mxu0 0
        %608 = vmatpush.bf16.msra.mxu0 0
        %609 = vmatpush.bf16.msra.mxu0 0
        %610 = vmatpush.bf16.msra.mxu0 %v417
        %611 = vmatpush.bf16.msra.mxu0 %v335
        %612 = vmatmul.bf16.gmra.mxu0 %v371
        %v613 = vpop.f32.mrf.mxu0
        %v614 = vadd.f32 0.0, %v613
        %v615 = vpop.f32.mrf.mxu0
        %616 = vdwg.mxu0
        %617 = vmatpush.bf16.msra.mxu0 0
        %618 = vmatpush.bf16.msra.mxu0 0
        %619 = vmatpush.bf16.msra.mxu0 0
        %620 = vmatpush.bf16.msra.mxu0 0
        %621 = vmatpush.bf16.msra.mxu0 0
        %622 = vmatpush.bf16.msra.mxu0 0
        %623 = vmatpush.bf16.msra.mxu0 %v420
        %624 = vmatpush.bf16.msra.mxu0 %v336
        %625 = vmatmul.bf16.gmra.mxu0 %v371
        %v626 = vpop.f32.mrf.mxu0
        %v627 = vadd.f32 0.0, %v626
        %v628 = vpop.f32.mrf.mxu0
        %629 = vdwg.mxu0
        %v630 = vld [vmem:[%s2] sm:$0xff]
        %632 = vset.pattern.permute.xlu0 0
        %633 = vperm.xlu0 %632, %v630
        %v634 = vpop.permute.xlu0 %633
        %vm636 = vcmp.ge.f32.partialorder %v432, %v634
        %vm637 = vcmp.ge.f32.partialorder %v445, %v634
        %vm638 = vcmp.ge.f32.partialorder %v458, %v634
        %vm639 = vcmp.ge.f32.partialorder %v471, %v634
        %vm640 = vcmp.ge.f32.partialorder %v484, %v634
        %vm641 = vcmp.ge.f32.partialorder %v497, %v634
        %vm642 = vcmp.ge.f32.partialorder %v510, %v634
        %vm643 = vcmp.ge.f32.partialorder %v523, %v634
        %vm644 = vcmp.ge.f32.partialorder %v536, %v634
        %vm645 = vcmp.ge.f32.partialorder %v549, %v634
        %vm646 = vcmp.ge.f32.partialorder %v562, %v634
        %vm647 = vcmp.ge.f32.partialorder %v575, %v634
        %vm648 = vcmp.ge.f32.partialorder %v588, %v634
        %vm649 = vcmp.ge.f32.partialorder %v601, %v634
        %vm650 = vcmp.ge.f32.partialorder %v614, %v634
        %vm651 = vcmp.ge.f32.partialorder %v627, %v634
        %v652 = vsel %vm636, 1, 0
        %v653 = vsel %vm637, 1, 0
        %v654 = vsel %vm638, 1, 0
        %v655 = vsel %vm639, 1, 0
        %v656 = vsel %vm640, 1, 0
        %v657 = vsel %vm641, 1, 0
        %v658 = vsel %vm642, 1, 0
        %v659 = vsel %vm643, 1, 0
        %v660 = vsel %vm644, 1, 0
        %v661 = vsel %vm645, 1, 0
        %v662 = vsel %vm646, 1, 0
        %v663 = vsel %vm647, 1, 0
        %v664 = vsel %vm648, 1, 0
        %v665 = vsel %vm649, 1, 0
        %v666 = vsel %vm650, 1, 0
        %v667 = vsel %vm651, 1, 0
        %v668 = vcvt.s32.f32 %v652
        %v669 = vcvt.s32.f32 %v653
        %v670 = vcvt.s32.f32 %v654
        %v671 = vcvt.s32.f32 %v655
        %v672 = vcvt.s32.f32 %v656
        %v673 = vcvt.s32.f32 %v657
        %v674 = vcvt.s32.f32 %v658
        %v675 = vcvt.s32.f32 %v659
        %v676 = vcvt.s32.f32 %v660
        %v677 = vcvt.s32.f32 %v661
        %v678 = vcvt.s32.f32 %v662
        %v679 = vcvt.s32.f32 %v663
        %v680 = vcvt.s32.f32 %v664
        %v681 = vcvt.s32.f32 %v665
        %v682 = vcvt.s32.f32 %v666
        %v683 = vcvt.s32.f32 %v667
        %v684 = vpack.c.bf16 %v669, %v668
        %v685 = vpack.c.bf16 %v671, %v670
        %v686 = vpack.c.bf16 %v673, %v672
        %v687 = vpack.c.bf16 %v675, %v674
        %v688 = vpack.c.bf16 %v677, %v676
        %v689 = vpack.c.bf16 %v679, %v678
        %v690 = vpack.c.bf16 %v681, %v680
        %v691 = vpack.c.bf16 %v683, %v682
        %v692 = vrot.slane %v688, 4
        %vm693 = vcmask 1047556
        %v694 = vsel %vm693, %v692, %v684
        %v695 = vrot.slane %v684, 4
        %v696 = vsel %vm693, %v688, %v695
        %v698 = vunpack.c.l.s4 1983009808
        %v699 = vunpack.c.0.s8 %v698
        %v700 = vperm.slane %v694, %v699
        %v702 = vunpack.c.l.s4 1983009808
        %v703 = vunpack.c.0.s8 %v702
        %v704 = vperm.slane %v696, %v703
        %v705 = vrot.slane %v690, 4
        %v706 = vsel %vm693, %v705, %v686
        %v707 = vrot.slane %v686, 4
        %v708 = vsel %vm693, %v690, %v707
        %v710 = vunpack.c.l.s4 1983009808
        %v711 = vunpack.c.0.s8 %v710
        %v712 = vperm.slane %v706, %v711
        %v714 = vunpack.c.l.s4 1983009808
        %v715 = vunpack.c.0.s8 %v714
        %v716 = vperm.slane %v708, %v715
        %v717 = vrot.slane %v712, 4
        %v718 = vsel %vm693, %v717, %v700
        %v719 = vrot.slane %v700, 4
        %v720 = vsel %vm693, %v712, %v719
        %v722 = vunpack.c.l.s4 1934713408
        %v723 = vunpack.c.0.s8 %v722
        %v724 = vperm.slane %v718, %v723
        %v726 = vunpack.c.l.s4 1934713408
        %v727 = vunpack.c.0.s8 %v726
        %v728 = vperm.slane %v720, %v727
        %v729 = vrot.slane %v716, 4
        %v730 = vsel %vm693, %v729, %v704
        %v731 = vrot.slane %v704, 4
        %v732 = vsel %vm693, %v716, %v731
        %v734 = vunpack.c.l.s4 1934713408
        %v735 = vunpack.c.0.s8 %v734
        %v736 = vperm.slane %v730, %v735
        %v738 = vunpack.c.l.s4 1934713408
        %v739 = vunpack.c.0.s8 %v738
        %v740 = vperm.slane %v732, %v739
        %v741 = vrot.slane %v736, 4
        %v742 = vsel %vm693, %v741, %v724
        %v743 = vrot.slane %v724, 4
        %v744 = vsel %vm693, %v736, %v743
        %v745 = vrot.slane %v740, 4
        %v746 = vsel %vm693, %v745, %v728
        %v747 = vrot.slane %v728, 4
        %v748 = vsel %vm693, %v740, %v747
        %v749 = vrot.slane %v689, 4
        %v750 = vsel %vm693, %v749, %v685
        %v751 = vrot.slane %v685, 4
        %v752 = vsel %vm693, %v689, %v751
        %v754 = vunpack.c.l.s4 1983009808
        %v755 = vunpack.c.0.s8 %v754
        %v756 = vperm.slane %v750, %v755
        %v758 = vunpack.c.l.s4 1983009808
        %v759 = vunpack.c.0.s8 %v758
        %v760 = vperm.slane %v752, %v759
        %v761 = vrot.slane %v691, 4
        %v762 = vsel %vm693, %v761, %v687
        %v763 = vrot.slane %v687, 4
        %v764 = vsel %vm693, %v691, %v763
        %v766 = vunpack.c.l.s4 1983009808
        %v767 = vunpack.c.0.s8 %v766
        %v768 = vperm.slane %v762, %v767
        %v770 = vunpack.c.l.s4 1983009808
        %v771 = vunpack.c.0.s8 %v770
        %v772 = vperm.slane %v764, %v771
        %v773 = vrot.slane %v768, 4
        %v774 = vsel %vm693, %v773, %v756
        %v775 = vrot.slane %v756, 4
        %v776 = vsel %vm693, %v768, %v775
        %v778 = vunpack.c.l.s4 1934713408
        %v779 = vunpack.c.0.s8 %v778
        %v780 = vperm.slane %v774, %v779
        %v782 = vunpack.c.l.s4 1934713408
        %v783 = vunpack.c.0.s8 %v782
        %v784 = vperm.slane %v776, %v783
        %v785 = vrot.slane %v772, 4
        %v786 = vsel %vm693, %v785, %v760
        %v787 = vrot.slane %v760, 4
        %v788 = vsel %vm693, %v772, %v787
        %v790 = vunpack.c.l.s4 1934713408
        %v791 = vunpack.c.0.s8 %v790
        %v792 = vperm.slane %v786, %v791
        %v794 = vunpack.c.l.s4 1934713408
        %v795 = vunpack.c.0.s8 %v794
        %v796 = vperm.slane %v788, %v795
        %v797 = vrot.slane %v792, 4
        %v798 = vsel %vm693, %v797, %v780
        %v799 = vrot.slane %v780, 4
        %v800 = vsel %vm693, %v792, %v799
        %v801 = vrot.slane %v796, 4
        %v802 = vsel %vm693, %v801, %v784
        %v803 = vrot.slane %v784, 4
        %v804 = vsel %vm693, %v796, %v803
        %v807 = vpack.i.b16 %v798, %v742
        %v808 = vshrl.u32 %v742, 16
        %v809 = vshrl.u32 %v798, 16
        %v810 = vpack.i.b16 %v809, %v808
        %v813 = vpack.i.b16 %v800, %v744
        %v814 = vshrl.u32 %v744, 16
        %v815 = vshrl.u32 %v800, 16
        %v816 = vpack.i.b16 %v815, %v814
        %v819 = vpack.i.b16 %v802, %v746
        %v820 = vshrl.u32 %v746, 16
        %v821 = vshrl.u32 %v802, 16
        %v822 = vpack.i.b16 %v821, %v820
        %v825 = vpack.i.b16 %v804, %v748
        %v826 = vshrl.u32 %v748, 16
        %v827 = vshrl.u32 %v804, 16
        %v828 = vpack.i.b16 %v827, %v826
        %v829 = vld [vmem:[%s3] sm:$0xf]
        %v830 = vld [vmem:[%s3 + $0x4] sm:$0xf]
        %v831 = vld [vmem:[%s3 + $0x8] sm:$0xf]
        %v832 = vld [vmem:[%s3 + $0xc] sm:$0xf]
        %v833 = vld [vmem:[%s3 + $0x10] sm:$0xf]
        %v834 = vld [vmem:[%s3 + $0x14] sm:$0xf]
        %v835 = vld [vmem:[%s3 + $0x18] sm:$0xf]
        %v836 = vld [vmem:[%s3 + $0x1c] sm:$0xf]
        %v837 = vld [vmem:[%s3 + $0x20] sm:$0xf]
        %v838 = vld [vmem:[%s3 + $0x24] sm:$0xf]
        %v839 = vld [vmem:[%s3 + $0x28] sm:$0xf]
        %v840 = vld [vmem:[%s3 + $0x2c] sm:$0xf]
        %v841 = vld [vmem:[%s3 + $0x30] sm:$0xf]
        %v842 = vld [vmem:[%s3 + $0x34] sm:$0xf]
        %v843 = vld [vmem:[%s3 + $0x38] sm:$0xf]
        %v844 = vld [vmem:[%s3 + $0x3c] sm:$0xf]
        %v845 = vld [vmem:[%s3 + $0x40] sm:$0xf]
        %v846 = vld [vmem:[%s3 + $0x44] sm:$0xf]
        %v847 = vld [vmem:[%s3 + $0x48] sm:$0xf]
        %v848 = vld [vmem:[%s3 + $0x4c] sm:$0xf]
        %v849 = vld [vmem:[%s3 + $0x50] sm:$0xf]
        %v850 = vld [vmem:[%s3 + $0x54] sm:$0xf]
        %v851 = vld [vmem:[%s3 + $0x58] sm:$0xf]
        %v852 = vld [vmem:[%s3 + $0x5c] sm:$0xf]
        %v853 = vld [vmem:[%s3 + $0x60] sm:$0xf]
        %v854 = vld [vmem:[%s3 + $0x64] sm:$0xf]
        %v855 = vld [vmem:[%s3 + $0x68] sm:$0xf]
        %v856 = vld [vmem:[%s3 + $0x6c] sm:$0xf]
        %v857 = vld [vmem:[%s3 + $0x70] sm:$0xf]
        %v858 = vld [vmem:[%s3 + $0x74] sm:$0xf]
        %v859 = vld [vmem:[%s3 + $0x78] sm:$0xf]
        %v860 = vld [vmem:[%s3 + $0x7c] sm:$0xf]
        %s861 = scalar_lea.vmem %s3, 128
        %v862 = vld [vmem:[%s861] sm:$0xf]
        %v863 = vld [vmem:[%s861 + $0x4] sm:$0xf]
        %v864 = vld [vmem:[%s861 + $0x8] sm:$0xf]
        %v865 = vld [vmem:[%s861 + $0xc] sm:$0xf]
        %v866 = vld [vmem:[%s861 + $0x10] sm:$0xf]
        %v867 = vld [vmem:[%s861 + $0x14] sm:$0xf]
        %v868 = vld [vmem:[%s861 + $0x18] sm:$0xf]
        %v869 = vld [vmem:[%s861 + $0x1c] sm:$0xf]
        %v870 = vld [vmem:[%s861 + $0x20] sm:$0xf]
        %v871 = vld [vmem:[%s861 + $0x24] sm:$0xf]
        %v872 = vld [vmem:[%s861 + $0x28] sm:$0xf]
        %v873 = vld [vmem:[%s861 + $0x2c] sm:$0xf]
        %v874 = vld [vmem:[%s861 + $0x30] sm:$0xf]
        %v875 = vld [vmem:[%s861 + $0x34] sm:$0xf]
        %v876 = vld [vmem:[%s861 + $0x38] sm:$0xf]
        %v877 = vld [vmem:[%s861 + $0x3c] sm:$0xf]
        %v878 = vld [vmem:[%s861 + $0x40] sm:$0xf]
        %v879 = vld [vmem:[%s861 + $0x44] sm:$0xf]
        %v880 = vld [vmem:[%s861 + $0x48] sm:$0xf]
        %v881 = vld [vmem:[%s861 + $0x4c] sm:$0xf]
        %v882 = vld [vmem:[%s861 + $0x50] sm:$0xf]
        %v883 = vld [vmem:[%s861 + $0x54] sm:$0xf]
        %v884 = vld [vmem:[%s861 + $0x58] sm:$0xf]
        %v885 = vld [vmem:[%s861 + $0x5c] sm:$0xf]
        %v886 = vld [vmem:[%s861 + $0x60] sm:$0xf]
        %v887 = vld [vmem:[%s861 + $0x64] sm:$0xf]
        %v888 = vld [vmem:[%s861 + $0x68] sm:$0xf]
        %v889 = vld [vmem:[%s861 + $0x6c] sm:$0xf]
        %v890 = vld [vmem:[%s861 + $0x70] sm:$0xf]
        %v891 = vld [vmem:[%s861 + $0x74] sm:$0xf]
        %v892 = vld [vmem:[%s861 + $0x78] sm:$0xf]
        %v893 = vld [vmem:[%s861 + $0x7c] sm:$0xf]
        %v894 = vunpack.c.l.b16 %v810
        %v895 = vunpack.c.h.b16 %v810
        %v896 = vpack.c.b16 %v894, %v894
        %v897 = vpack.c.b16 %v895, %v895
        %v932 = vunpack.c.l.b16 %v862
        %v933 = vunpack.c.l.b16 %v863
        %v934 = vunpack.c.l.b16 %v864
        %v935 = vunpack.c.l.b16 %v865
        %v936 = vunpack.c.l.b16 %v866
        %v937 = vunpack.c.l.b16 %v867
        %v938 = vunpack.c.l.b16 %v868
        %v939 = vunpack.c.l.b16 %v869
        %v940 = vunpack.c.l.b16 %v870
        %v941 = vunpack.c.l.b16 %v871
        %v942 = vunpack.c.l.b16 %v872
        %v943 = vunpack.c.l.b16 %v873
        %v944 = vunpack.c.l.b16 %v874
        %v945 = vunpack.c.l.b16 %v875
        %v946 = vunpack.c.l.b16 %v876
        %v947 = vunpack.c.l.b16 %v877
        %v948 = vunpack.c.l.b16 %v878
        %v949 = vunpack.c.l.b16 %v879
        %v950 = vunpack.c.l.b16 %v880
        %v951 = vunpack.c.l.b16 %v881
        %v952 = vunpack.c.l.b16 %v882
        %v953 = vunpack.c.l.b16 %v883
        %v954 = vunpack.c.l.b16 %v884
        %v955 = vunpack.c.l.b16 %v885
        %v956 = vunpack.c.l.b16 %v886
        %v957 = vunpack.c.l.b16 %v887
        %v958 = vunpack.c.l.b16 %v888
        %v959 = vunpack.c.l.b16 %v889
        %v960 = vunpack.c.l.b16 %v890
        %v961 = vunpack.c.l.b16 %v891
        %v962 = vunpack.c.l.b16 %v892
        %v963 = vunpack.c.l.b16 %v893
        %v964 = vpack.c.b16 %v933, %v932
        %v965 = vpack.c.b16 %v935, %v934
        %v966 = vpack.c.b16 %v937, %v936
        %v967 = vpack.c.b16 %v939, %v938
        %v968 = vpack.c.b16 %v941, %v940
        %v969 = vpack.c.b16 %v943, %v942
        %v970 = vpack.c.b16 %v945, %v944
        %v971 = vpack.c.b16 %v947, %v946
        %v972 = vpack.c.b16 %v949, %v948
        %v973 = vpack.c.b16 %v951, %v950
        %v974 = vpack.c.b16 %v953, %v952
        %v975 = vpack.c.b16 %v955, %v954
        %v976 = vpack.c.b16 %v957, %v956
        %v977 = vpack.c.b16 %v959, %v958
        %v978 = vpack.c.b16 %v961, %v960
        %v979 = vpack.c.b16 %v963, %v962
        %996 = vmatpush.bf16.msra.mxu0 %v971
        %997 = vmatpush.bf16.msra.mxu0 %v970
        %998 = vmatpush.bf16.msra.mxu0 %v969
        %999 = vmatpush.bf16.msra.mxu0 %v968
        %1000 = vmatpush.bf16.msra.mxu0 %v967
        %1001 = vmatpush.bf16.msra.mxu0 %v966
        %1002 = vmatpush.bf16.msra.mxu0 %v965
        %1003 = vmatpush.bf16.msra.mxu0 %v964
        %1004 = vmatmul.bf16.gmra.mxu0 %v896
        %v1005 = vpop.f32.mrf.mxu0
        %v1006 = vadd.f32 0.0, %v1005
        %v1007 = vpop.f32.mrf.mxu0
        %1008 = vdwg.mxu0
        %1009 = vmatpush.bf16.msra.mxu0 %v979
        %1010 = vmatpush.bf16.msra.mxu0 %v978
        %1011 = vmatpush.bf16.msra.mxu0 %v977
        %1012 = vmatpush.bf16.msra.mxu0 %v976
        %1013 = vmatpush.bf16.msra.mxu0 %v975
        %1014 = vmatpush.bf16.msra.mxu0 %v974
        %1015 = vmatpush.bf16.msra.mxu0 %v973
        %1016 = vmatpush.bf16.msra.mxu0 %v972
        %1017 = vmatmul.bf16.gmra.mxu0 %v897
        %v1018 = vpop.f32.mrf.mxu0
        %v1019 = vadd.f32 %v1006, %v1018
        %v1020 = vpop.f32.mrf.mxu0
        %1021 = vdwg.mxu0
        %v1022 = vunpack.c.l.b16 %v807
        %v1023 = vunpack.c.h.b16 %v807
        %v1024 = vpack.c.b16 %v1022, %v1022
        %v1025 = vpack.c.b16 %v1023, %v1023
        %v1060 = vunpack.c.l.b16 %v829
        %v1061 = vunpack.c.l.b16 %v830
        %v1062 = vunpack.c.l.b16 %v831
        %v1063 = vunpack.c.l.b16 %v832
        %v1064 = vunpack.c.l.b16 %v833
        %v1065 = vunpack.c.l.b16 %v834
        %v1066 = vunpack.c.l.b16 %v835
        %v1067 = vunpack.c.l.b16 %v836
        %v1068 = vunpack.c.l.b16 %v837
        %v1069 = vunpack.c.l.b16 %v838
        %v1070 = vunpack.c.l.b16 %v839
        %v1071 = vunpack.c.l.b16 %v840
        %v1072 = vunpack.c.l.b16 %v841
        %v1073 = vunpack.c.l.b16 %v842
        %v1074 = vunpack.c.l.b16 %v843
        %v1075 = vunpack.c.l.b16 %v844
        %v1076 = vunpack.c.l.b16 %v845
        %v1077 = vunpack.c.l.b16 %v846
        %v1078 = vunpack.c.l.b16 %v847
        %v1079 = vunpack.c.l.b16 %v848
        %v1080 = vunpack.c.l.b16 %v849
        %v1081 = vunpack.c.l.b16 %v850
        %v1082 = vunpack.c.l.b16 %v851
        %v1083 = vunpack.c.l.b16 %v852
        %v1084 = vunpack.c.l.b16 %v853
        %v1085 = vunpack.c.l.b16 %v854
        %v1086 = vunpack.c.l.b16 %v855
        %v1087 = vunpack.c.l.b16 %v856
        %v1088 = vunpack.c.l.b16 %v857
        %v1089 = vunpack.c.l.b16 %v858
        %v1090 = vunpack.c.l.b16 %v859
        %v1091 = vunpack.c.l.b16 %v860
        %v1092 = vpack.c.b16 %v1061, %v1060
        %v1093 = vpack.c.b16 %v1063, %v1062
        %v1094 = vpack.c.b16 %v1065, %v1064
        %v1095 = vpack.c.b16 %v1067, %v1066
        %v1096 = vpack.c.b16 %v1069, %v1068
        %v1097 = vpack.c.b16 %v1071, %v1070
        %v1098 = vpack.c.b16 %v1073, %v1072
        %v1099 = vpack.c.b16 %v1075, %v1074
        %v1100 = vpack.c.b16 %v1077, %v1076
        %v1101 = vpack.c.b16 %v1079, %v1078
        %v1102 = vpack.c.b16 %v1081, %v1080
        %v1103 = vpack.c.b16 %v1083, %v1082
        %v1104 = vpack.c.b16 %v1085, %v1084
        %v1105 = vpack.c.b16 %v1087, %v1086
        %v1106 = vpack.c.b16 %v1089, %v1088
        %v1107 = vpack.c.b16 %v1091, %v1090
        %1124 = vmatpush.bf16.msra.mxu0 %v1099
        %1125 = vmatpush.bf16.msra.mxu0 %v1098
        %1126 = vmatpush.bf16.msra.mxu0 %v1097
        %1127 = vmatpush.bf16.msra.mxu0 %v1096
        %1128 = vmatpush.bf16.msra.mxu0 %v1095
        %1129 = vmatpush.bf16.msra.mxu0 %v1094
        %1130 = vmatpush.bf16.msra.mxu0 %v1093
        %1131 = vmatpush.bf16.msra.mxu0 %v1092
        %1132 = vmatmul.bf16.gmra.mxu0 %v1024
        %v1133 = vpop.f32.mrf.mxu0
        %v1134 = vadd.f32 %v1019, %v1133
        %v1135 = vpop.f32.mrf.mxu0
        %1136 = vdwg.mxu0
        %1137 = vmatpush.bf16.msra.mxu0 %v1107
        %1138 = vmatpush.bf16.msra.mxu0 %v1106
        %1139 = vmatpush.bf16.msra.mxu0 %v1105
        %1140 = vmatpush.bf16.msra.mxu0 %v1104
        %1141 = vmatpush.bf16.msra.mxu0 %v1103
        %1142 = vmatpush.bf16.msra.mxu0 %v1102
        %1143 = vmatpush.bf16.msra.mxu0 %v1101
        %1144 = vmatpush.bf16.msra.mxu0 %v1100
        %1145 = vmatmul.bf16.gmra.mxu0 %v1025
        %v1146 = vpop.f32.mrf.mxu0
        %v1147 = vadd.f32 %v1134, %v1146
        %v1148 = vpop.f32.mrf.mxu0
        %1149 = vdwg.mxu0
        %s1150 = scalar_lea.vmem %s3, 256
        %v1151 = vld [vmem:[%s1150] sm:$0xf]
        %v1152 = vld [vmem:[%s1150 + $0x4] sm:$0xf]
        %v1153 = vld [vmem:[%s1150 + $0x8] sm:$0xf]
        %v1154 = vld [vmem:[%s1150 + $0xc] sm:$0xf]
        %v1155 = vld [vmem:[%s1150 + $0x10] sm:$0xf]
        %v1156 = vld [vmem:[%s1150 + $0x14] sm:$0xf]
        %v1157 = vld [vmem:[%s1150 + $0x18] sm:$0xf]
        %v1158 = vld [vmem:[%s1150 + $0x1c] sm:$0xf]
        %v1159 = vld [vmem:[%s1150 + $0x20] sm:$0xf]
        %v1160 = vld [vmem:[%s1150 + $0x24] sm:$0xf]
        %v1161 = vld [vmem:[%s1150 + $0x28] sm:$0xf]
        %v1162 = vld [vmem:[%s1150 + $0x2c] sm:$0xf]
        %v1163 = vld [vmem:[%s1150 + $0x30] sm:$0xf]
        %v1164 = vld [vmem:[%s1150 + $0x34] sm:$0xf]
        %v1165 = vld [vmem:[%s1150 + $0x38] sm:$0xf]
        %v1166 = vld [vmem:[%s1150 + $0x3c] sm:$0xf]
        %v1167 = vld [vmem:[%s1150 + $0x40] sm:$0xf]
        %v1168 = vld [vmem:[%s1150 + $0x44] sm:$0xf]
        %v1169 = vld [vmem:[%s1150 + $0x48] sm:$0xf]
        %v1170 = vld [vmem:[%s1150 + $0x4c] sm:$0xf]
        %v1171 = vld [vmem:[%s1150 + $0x50] sm:$0xf]
        %v1172 = vld [vmem:[%s1150 + $0x54] sm:$0xf]
        %v1173 = vld [vmem:[%s1150 + $0x58] sm:$0xf]
        %v1174 = vld [vmem:[%s1150 + $0x5c] sm:$0xf]
        %v1175 = vld [vmem:[%s1150 + $0x60] sm:$0xf]
        %v1176 = vld [vmem:[%s1150 + $0x64] sm:$0xf]
        %v1177 = vld [vmem:[%s1150 + $0x68] sm:$0xf]
        %v1178 = vld [vmem:[%s1150 + $0x6c] sm:$0xf]
        %v1179 = vld [vmem:[%s1150 + $0x70] sm:$0xf]
        %v1180 = vld [vmem:[%s1150 + $0x74] sm:$0xf]
        %v1181 = vld [vmem:[%s1150 + $0x78] sm:$0xf]
        %v1182 = vld [vmem:[%s1150 + $0x7c] sm:$0xf]
        %v1183 = vunpack.c.l.b16 %v813
        %v1184 = vunpack.c.h.b16 %v813
        %v1185 = vpack.c.b16 %v1183, %v1183
        %v1186 = vpack.c.b16 %v1184, %v1184
        %v1221 = vunpack.c.l.b16 %v1151
        %v1222 = vunpack.c.l.b16 %v1152
        %v1223 = vunpack.c.l.b16 %v1153
        %v1224 = vunpack.c.l.b16 %v1154
        %v1225 = vunpack.c.l.b16 %v1155
        %v1226 = vunpack.c.l.b16 %v1156
        %v1227 = vunpack.c.l.b16 %v1157
        %v1228 = vunpack.c.l.b16 %v1158
        %v1229 = vunpack.c.l.b16 %v1159
        %v1230 = vunpack.c.l.b16 %v1160
        %v1231 = vunpack.c.l.b16 %v1161
        %v1232 = vunpack.c.l.b16 %v1162
        %v1233 = vunpack.c.l.b16 %v1163
        %v1234 = vunpack.c.l.b16 %v1164
        %v1235 = vunpack.c.l.b16 %v1165
        %v1236 = vunpack.c.l.b16 %v1166
        %v1237 = vunpack.c.l.b16 %v1167
        %v1238 = vunpack.c.l.b16 %v1168
        %v1239 = vunpack.c.l.b16 %v1169
        %v1240 = vunpack.c.l.b16 %v1170
        %v1241 = vunpack.c.l.b16 %v1171
        %v1242 = vunpack.c.l.b16 %v1172
        %v1243 = vunpack.c.l.b16 %v1173
        %v1244 = vunpack.c.l.b16 %v1174
        %v1245 = vunpack.c.l.b16 %v1175
        %v1246 = vunpack.c.l.b16 %v1176
        %v1247 = vunpack.c.l.b16 %v1177
        %v1248 = vunpack.c.l.b16 %v1178
        %v1249 = vunpack.c.l.b16 %v1179
        %v1250 = vunpack.c.l.b16 %v1180
        %v1251 = vunpack.c.l.b16 %v1181
        %v1252 = vunpack.c.l.b16 %v1182
        %v1253 = vpack.c.b16 %v1222, %v1221
        %v1254 = vpack.c.b16 %v1224, %v1223
        %v1255 = vpack.c.b16 %v1226, %v1225
        %v1256 = vpack.c.b16 %v1228, %v1227
        %v1257 = vpack.c.b16 %v1230, %v1229
        %v1258 = vpack.c.b16 %v1232, %v1231
        %v1259 = vpack.c.b16 %v1234, %v1233
        %v1260 = vpack.c.b16 %v1236, %v1235
        %v1261 = vpack.c.b16 %v1238, %v1237
        %v1262 = vpack.c.b16 %v1240, %v1239
        %v1263 = vpack.c.b16 %v1242, %v1241
        %v1264 = vpack.c.b16 %v1244, %v1243
        %v1265 = vpack.c.b16 %v1246, %v1245
        %v1266 = vpack.c.b16 %v1248, %v1247
        %v1267 = vpack.c.b16 %v1250, %v1249
        %v1268 = vpack.c.b16 %v1252, %v1251
        %1285 = vmatpush.bf16.msra.mxu0 %v1260
        %1286 = vmatpush.bf16.msra.mxu0 %v1259
        %1287 = vmatpush.bf16.msra.mxu0 %v1258
        %1288 = vmatpush.bf16.msra.mxu0 %v1257
        %1289 = vmatpush.bf16.msra.mxu0 %v1256
        %1290 = vmatpush.bf16.msra.mxu0 %v1255
        %1291 = vmatpush.bf16.msra.mxu0 %v1254
        %1292 = vmatpush.bf16.msra.mxu0 %v1253
        %1293 = vmatmul.bf16.gmra.mxu0 %v1185
        %v1294 = vpop.f32.mrf.mxu0
        %v1295 = vadd.f32 0.0, %v1294
        %v1296 = vpop.f32.mrf.mxu0
        %1297 = vdwg.mxu0
        %1298 = vmatpush.bf16.msra.mxu0 %v1268
        %1299 = vmatpush.bf16.msra.mxu0 %v1267
        %1300 = vmatpush.bf16.msra.mxu0 %v1266
        %1301 = vmatpush.bf16.msra.mxu0 %v1265
        %1302 = vmatpush.bf16.msra.mxu0 %v1264
        %1303 = vmatpush.bf16.msra.mxu0 %v1263
        %1304 = vmatpush.bf16.msra.mxu0 %v1262
        %1305 = vmatpush.bf16.msra.mxu0 %v1261
        %1306 = vmatmul.bf16.gmra.mxu0 %v1186
        %v1307 = vpop.f32.mrf.mxu0
        %v1308 = vadd.f32 %v1295, %v1307
        %v1309 = vpop.f32.mrf.mxu0
        %1310 = vdwg.mxu0
        %v1311 = vadd.f32 %v1147, %v1308
        %s1312 = scalar_lea.vmem %s3, 384
        %v1313 = vld [vmem:[%s1312] sm:$0xf]
        %v1314 = vld [vmem:[%s1312 + $0x4] sm:$0xf]
        %v1315 = vld [vmem:[%s1312 + $0x8] sm:$0xf]
        %v1316 = vld [vmem:[%s1312 + $0xc] sm:$0xf]
        %v1317 = vld [vmem:[%s1312 + $0x10] sm:$0xf]
        %v1318 = vld [vmem:[%s1312 + $0x14] sm:$0xf]
        %v1319 = vld [vmem:[%s1312 + $0x18] sm:$0xf]
        %v1320 = vld [vmem:[%s1312 + $0x1c] sm:$0xf]
        %v1321 = vld [vmem:[%s1312 + $0x20] sm:$0xf]
        %v1322 = vld [vmem:[%s1312 + $0x24] sm:$0xf]
        %v1323 = vld [vmem:[%s1312 + $0x28] sm:$0xf]
        %v1324 = vld [vmem:[%s1312 + $0x2c] sm:$0xf]
        %v1325 = vld [vmem:[%s1312 + $0x30] sm:$0xf]
        %v1326 = vld [vmem:[%s1312 + $0x34] sm:$0xf]
        %v1327 = vld [vmem:[%s1312 + $0x38] sm:$0xf]
        %v1328 = vld [vmem:[%s1312 + $0x3c] sm:$0xf]
        %v1329 = vld [vmem:[%s1312 + $0x40] sm:$0xf]
        %v1330 = vld [vmem:[%s1312 + $0x44] sm:$0xf]
        %v1331 = vld [vmem:[%s1312 + $0x48] sm:$0xf]
        %v1332 = vld [vmem:[%s1312 + $0x4c] sm:$0xf]
        %v1333 = vld [vmem:[%s1312 + $0x50] sm:$0xf]
        %v1334 = vld [vmem:[%s1312 + $0x54] sm:$0xf]
        %v1335 = vld [vmem:[%s1312 + $0x58] sm:$0xf]
        %v1336 = vld [vmem:[%s1312 + $0x5c] sm:$0xf]
        %v1337 = vld [vmem:[%s1312 + $0x60] sm:$0xf]
        %v1338 = vld [vmem:[%s1312 + $0x64] sm:$0xf]
        %v1339 = vld [vmem:[%s1312 + $0x68] sm:$0xf]
        %v1340 = vld [vmem:[%s1312 + $0x6c] sm:$0xf]
        %v1341 = vld [vmem:[%s1312 + $0x70] sm:$0xf]
        %v1342 = vld [vmem:[%s1312 + $0x74] sm:$0xf]
        %v1343 = vld [vmem:[%s1312 + $0x78] sm:$0xf]
        %v1344 = vld [vmem:[%s1312 + $0x7c] sm:$0xf]
        %v1345 = vunpack.c.l.b16 %v816
        %v1346 = vunpack.c.h.b16 %v816
        %v1347 = vpack.c.b16 %v1345, %v1345
        %v1348 = vpack.c.b16 %v1346, %v1346
        %v1383 = vunpack.c.l.b16 %v1313
        %v1384 = vunpack.c.l.b16 %v1314
        %v1385 = vunpack.c.l.b16 %v1315
        %v1386 = vunpack.c.l.b16 %v1316
        %v1387 = vunpack.c.l.b16 %v1317
        %v1388 = vunpack.c.l.b16 %v1318
        %v1389 = vunpack.c.l.b16 %v1319
        %v1390 = vunpack.c.l.b16 %v1320
        %v1391 = vunpack.c.l.b16 %v1321
        %v1392 = vunpack.c.l.b16 %v1322
        %v1393 = vunpack.c.l.b16 %v1323
        %v1394 = vunpack.c.l.b16 %v1324
        %v1395 = vunpack.c.l.b16 %v1325
        %v1396 = vunpack.c.l.b16 %v1326
        %v1397 = vunpack.c.l.b16 %v1327
        %v1398 = vunpack.c.l.b16 %v1328
        %v1399 = vunpack.c.l.b16 %v1329
        %v1400 = vunpack.c.l.b16 %v1330
        %v1401 = vunpack.c.l.b16 %v1331
        %v1402 = vunpack.c.l.b16 %v1332
        %v1403 = vunpack.c.l.b16 %v1333
        %v1404 = vunpack.c.l.b16 %v1334
        %v1405 = vunpack.c.l.b16 %v1335
        %v1406 = vunpack.c.l.b16 %v1336
        %v1407 = vunpack.c.l.b16 %v1337
        %v1408 = vunpack.c.l.b16 %v1338
        %v1409 = vunpack.c.l.b16 %v1339
        %v1410 = vunpack.c.l.b16 %v1340
        %v1411 = vunpack.c.l.b16 %v1341
        %v1412 = vunpack.c.l.b16 %v1342
        %v1413 = vunpack.c.l.b16 %v1343
        %v1414 = vunpack.c.l.b16 %v1344
        %v1415 = vpack.c.b16 %v1384, %v1383
        %v1416 = vpack.c.b16 %v1386, %v1385
        %v1417 = vpack.c.b16 %v1388, %v1387
        %v1418 = vpack.c.b16 %v1390, %v1389
        %v1419 = vpack.c.b16 %v1392, %v1391
        %v1420 = vpack.c.b16 %v1394, %v1393
        %v1421 = vpack.c.b16 %v1396, %v1395
        %v1422 = vpack.c.b16 %v1398, %v1397
        %v1423 = vpack.c.b16 %v1400, %v1399
        %v1424 = vpack.c.b16 %v1402, %v1401
        %v1425 = vpack.c.b16 %v1404, %v1403
        %v1426 = vpack.c.b16 %v1406, %v1405
        %v1427 = vpack.c.b16 %v1408, %v1407
        %v1428 = vpack.c.b16 %v1410, %v1409
        %v1429 = vpack.c.b16 %v1412, %v1411
        %v1430 = vpack.c.b16 %v1414, %v1413
        %1447 = vmatpush.bf16.msra.mxu0 %v1422
        %1448 = vmatpush.bf16.msra.mxu0 %v1421
        %1449 = vmatpush.bf16.msra.mxu0 %v1420
        %1450 = vmatpush.bf16.msra.mxu0 %v1419
        %1451 = vmatpush.bf16.msra.mxu0 %v1418
        %1452 = vmatpush.bf16.msra.mxu0 %v1417
        %1453 = vmatpush.bf16.msra.mxu0 %v1416
        %1454 = vmatpush.bf16.msra.mxu0 %v1415
        %1455 = vmatmul.bf16.gmra.mxu0 %v1347
        %v1456 = vpop.f32.mrf.mxu0
        %v1457 = vadd.f32 0.0, %v1456
        %v1458 = vpop.f32.mrf.mxu0
        %1459 = vdwg.mxu0
        %1460 = vmatpush.bf16.msra.mxu0 %v1430
        %1461 = vmatpush.bf16.msra.mxu0 %v1429
        %1462 = vmatpush.bf16.msra.mxu0 %v1428
        %1463 = vmatpush.bf16.msra.mxu0 %v1427
        %1464 = vmatpush.bf16.msra.mxu0 %v1426
        %1465 = vmatpush.bf16.msra.mxu0 %v1425
        %1466 = vmatpush.bf16.msra.mxu0 %v1424
        %1467 = vmatpush.bf16.msra.mxu0 %v1423
        %1468 = vmatmul.bf16.gmra.mxu0 %v1348
        %v1469 = vpop.f32.mrf.mxu0
        %v1470 = vadd.f32 %v1457, %v1469
        %v1471 = vpop.f32.mrf.mxu0
        %1472 = vdwg.mxu0
        %v1473 = vadd.f32 %v1311, %v1470
        %s1474 = scalar_lea.vmem %s3, 512
        %v1475 = vld [vmem:[%s1474] sm:$0xf]
        %v1476 = vld [vmem:[%s1474 + $0x4] sm:$0xf]
        %v1477 = vld [vmem:[%s1474 + $0x8] sm:$0xf]
        %v1478 = vld [vmem:[%s1474 + $0xc] sm:$0xf]
        %v1479 = vld [vmem:[%s1474 + $0x10] sm:$0xf]
        %v1480 = vld [vmem:[%s1474 + $0x14] sm:$0xf]
        %v1481 = vld [vmem:[%s1474 + $0x18] sm:$0xf]
        %v1482 = vld [vmem:[%s1474 + $0x1c] sm:$0xf]
        %v1483 = vld [vmem:[%s1474 + $0x20] sm:$0xf]
        %v1484 = vld [vmem:[%s1474 + $0x24] sm:$0xf]
        %v1485 = vld [vmem:[%s1474 + $0x28] sm:$0xf]
        %v1486 = vld [vmem:[%s1474 + $0x2c] sm:$0xf]
        %v1487 = vld [vmem:[%s1474 + $0x30] sm:$0xf]
        %v1488 = vld [vmem:[%s1474 + $0x34] sm:$0xf]
        %v1489 = vld [vmem:[%s1474 + $0x38] sm:$0xf]
        %v1490 = vld [vmem:[%s1474 + $0x3c] sm:$0xf]
        %v1491 = vld [vmem:[%s1474 + $0x40] sm:$0xf]
        %v1492 = vld [vmem:[%s1474 + $0x44] sm:$0xf]
        %v1493 = vld [vmem:[%s1474 + $0x48] sm:$0xf]
        %v1494 = vld [vmem:[%s1474 + $0x4c] sm:$0xf]
        %v1495 = vld [vmem:[%s1474 + $0x50] sm:$0xf]
        %v1496 = vld [vmem:[%s1474 + $0x54] sm:$0xf]
        %v1497 = vld [vmem:[%s1474 + $0x58] sm:$0xf]
        %v1498 = vld [vmem:[%s1474 + $0x5c] sm:$0xf]
        %v1499 = vld [vmem:[%s1474 + $0x60] sm:$0xf]
        %v1500 = vld [vmem:[%s1474 + $0x64] sm:$0xf]
        %v1501 = vld [vmem:[%s1474 + $0x68] sm:$0xf]
        %v1502 = vld [vmem:[%s1474 + $0x6c] sm:$0xf]
        %v1503 = vld [vmem:[%s1474 + $0x70] sm:$0xf]
        %v1504 = vld [vmem:[%s1474 + $0x74] sm:$0xf]
        %v1505 = vld [vmem:[%s1474 + $0x78] sm:$0xf]
        %v1506 = vld [vmem:[%s1474 + $0x7c] sm:$0xf]
        %v1507 = vunpack.c.l.b16 %v819
        %v1508 = vunpack.c.h.b16 %v819
        %v1509 = vpack.c.b16 %v1507, %v1507
        %v1510 = vpack.c.b16 %v1508, %v1508
        %v1545 = vunpack.c.l.b16 %v1475
        %v1546 = vunpack.c.l.b16 %v1476
        %v1547 = vunpack.c.l.b16 %v1477
        %v1548 = vunpack.c.l.b16 %v1478
        %v1549 = vunpack.c.l.b16 %v1479
        %v1550 = vunpack.c.l.b16 %v1480
        %v1551 = vunpack.c.l.b16 %v1481
        %v1552 = vunpack.c.l.b16 %v1482
        %v1553 = vunpack.c.l.b16 %v1483
        %v1554 = vunpack.c.l.b16 %v1484
        %v1555 = vunpack.c.l.b16 %v1485
        %v1556 = vunpack.c.l.b16 %v1486
        %v1557 = vunpack.c.l.b16 %v1487
        %v1558 = vunpack.c.l.b16 %v1488
        %v1559 = vunpack.c.l.b16 %v1489
        %v1560 = vunpack.c.l.b16 %v1490
        %v1561 = vunpack.c.l.b16 %v1491
        %v1562 = vunpack.c.l.b16 %v1492
        %v1563 = vunpack.c.l.b16 %v1493
        %v1564 = vunpack.c.l.b16 %v1494
        %v1565 = vunpack.c.l.b16 %v1495
        %v1566 = vunpack.c.l.b16 %v1496
        %v1567 = vunpack.c.l.b16 %v1497
        %v1568 = vunpack.c.l.b16 %v1498
        %v1569 = vunpack.c.l.b16 %v1499
        %v1570 = vunpack.c.l.b16 %v1500
        %v1571 = vunpack.c.l.b16 %v1501
        %v1572 = vunpack.c.l.b16 %v1502
        %v1573 = vunpack.c.l.b16 %v1503
        %v1574 = vunpack.c.l.b16 %v1504
        %v1575 = vunpack.c.l.b16 %v1505
        %v1576 = vunpack.c.l.b16 %v1506
        %v1577 = vpack.c.b16 %v1546, %v1545
        %v1578 = vpack.c.b16 %v1548, %v1547
        %v1579 = vpack.c.b16 %v1550, %v1549
        %v1580 = vpack.c.b16 %v1552, %v1551
        %v1581 = vpack.c.b16 %v1554, %v1553
        %v1582 = vpack.c.b16 %v1556, %v1555
        %v1583 = vpack.c.b16 %v1558, %v1557
        %v1584 = vpack.c.b16 %v1560, %v1559
        %v1585 = vpack.c.b16 %v1562, %v1561
        %v1586 = vpack.c.b16 %v1564, %v1563
        %v1587 = vpack.c.b16 %v1566, %v1565
        %v1588 = vpack.c.b16 %v1568, %v1567
        %v1589 = vpack.c.b16 %v1570, %v1569
        %v1590 = vpack.c.b16 %v1572, %v1571
        %v1591 = vpack.c.b16 %v1574, %v1573
        %v1592 = vpack.c.b16 %v1576, %v1575
        %1609 = vmatpush.bf16.msra.mxu0 %v1584
        %1610 = vmatpush.bf16.msra.mxu0 %v1583
        %1611 = vmatpush.bf16.msra.mxu0 %v1582
        %1612 = vmatpush.bf16.msra.mxu0 %v1581
        %1613 = vmatpush.bf16.msra.mxu0 %v1580
        %1614 = vmatpush.bf16.msra.mxu0 %v1579
        %1615 = vmatpush.bf16.msra.mxu0 %v1578
        %1616 = vmatpush.bf16.msra.mxu0 %v1577
        %1617 = vmatmul.bf16.gmra.mxu0 %v1509
        %v1618 = vpop.f32.mrf.mxu0
        %v1619 = vadd.f32 0.0, %v1618
        %v1620 = vpop.f32.mrf.mxu0
        %1621 = vdwg.mxu0
        %1622 = vmatpush.bf16.msra.mxu0 %v1592
        %1623 = vmatpush.bf16.msra.mxu0 %v1591
        %1624 = vmatpush.bf16.msra.mxu0 %v1590
        %1625 = vmatpush.bf16.msra.mxu0 %v1589
        %1626 = vmatpush.bf16.msra.mxu0 %v1588
        %1627 = vmatpush.bf16.msra.mxu0 %v1587
        %1628 = vmatpush.bf16.msra.mxu0 %v1586
        %1629 = vmatpush.bf16.msra.mxu0 %v1585
        %1630 = vmatmul.bf16.gmra.mxu0 %v1510
        %v1631 = vpop.f32.mrf.mxu0
        %v1632 = vadd.f32 %v1619, %v1631
        %v1633 = vpop.f32.mrf.mxu0
        %1634 = vdwg.mxu0
        %v1635 = vadd.f32 %v1473, %v1632
        %s1636 = scalar_lea.vmem %s3, 640
        %v1637 = vld [vmem:[%s1636] sm:$0xf]
        %v1638 = vld [vmem:[%s1636 + $0x4] sm:$0xf]
        %v1639 = vld [vmem:[%s1636 + $0x8] sm:$0xf]
        %v1640 = vld [vmem:[%s1636 + $0xc] sm:$0xf]
        %v1641 = vld [vmem:[%s1636 + $0x10] sm:$0xf]
        %v1642 = vld [vmem:[%s1636 + $0x14] sm:$0xf]
        %v1643 = vld [vmem:[%s1636 + $0x18] sm:$0xf]
        %v1644 = vld [vmem:[%s1636 + $0x1c] sm:$0xf]
        %v1645 = vld [vmem:[%s1636 + $0x20] sm:$0xf]
        %v1646 = vld [vmem:[%s1636 + $0x24] sm:$0xf]
        %v1647 = vld [vmem:[%s1636 + $0x28] sm:$0xf]
        %v1648 = vld [vmem:[%s1636 + $0x2c] sm:$0xf]
        %v1649 = vld [vmem:[%s1636 + $0x30] sm:$0xf]
        %v1650 = vld [vmem:[%s1636 + $0x34] sm:$0xf]
        %v1651 = vld [vmem:[%s1636 + $0x38] sm:$0xf]
        %v1652 = vld [vmem:[%s1636 + $0x3c] sm:$0xf]
        %v1653 = vld [vmem:[%s1636 + $0x40] sm:$0xf]
        %v1654 = vld [vmem:[%s1636 + $0x44] sm:$0xf]
        %v1655 = vld [vmem:[%s1636 + $0x48] sm:$0xf]
        %v1656 = vld [vmem:[%s1636 + $0x4c] sm:$0xf]
        %v1657 = vld [vmem:[%s1636 + $0x50] sm:$0xf]
        %v1658 = vld [vmem:[%s1636 + $0x54] sm:$0xf]
        %v1659 = vld [vmem:[%s1636 + $0x58] sm:$0xf]
        %v1660 = vld [vmem:[%s1636 + $0x5c] sm:$0xf]
        %v1661 = vld [vmem:[%s1636 + $0x60] sm:$0xf]
        %v1662 = vld [vmem:[%s1636 + $0x64] sm:$0xf]
        %v1663 = vld [vmem:[%s1636 + $0x68] sm:$0xf]
        %v1664 = vld [vmem:[%s1636 + $0x6c] sm:$0xf]
        %v1665 = vld [vmem:[%s1636 + $0x70] sm:$0xf]
        %v1666 = vld [vmem:[%s1636 + $0x74] sm:$0xf]
        %v1667 = vld [vmem:[%s1636 + $0x78] sm:$0xf]
        %v1668 = vld [vmem:[%s1636 + $0x7c] sm:$0xf]
        %v1669 = vunpack.c.l.b16 %v822
        %v1670 = vunpack.c.h.b16 %v822
        %v1671 = vpack.c.b16 %v1669, %v1669
        %v1672 = vpack.c.b16 %v1670, %v1670
        %v1707 = vunpack.c.l.b16 %v1637
        %v1708 = vunpack.c.l.b16 %v1638
        %v1709 = vunpack.c.l.b16 %v1639
        %v1710 = vunpack.c.l.b16 %v1640
        %v1711 = vunpack.c.l.b16 %v1641
        %v1712 = vunpack.c.l.b16 %v1642
        %v1713 = vunpack.c.l.b16 %v1643
        %v1714 = vunpack.c.l.b16 %v1644
        %v1715 = vunpack.c.l.b16 %v1645
        %v1716 = vunpack.c.l.b16 %v1646
        %v1717 = vunpack.c.l.b16 %v1647
        %v1718 = vunpack.c.l.b16 %v1648
        %v1719 = vunpack.c.l.b16 %v1649
        %v1720 = vunpack.c.l.b16 %v1650
        %v1721 = vunpack.c.l.b16 %v1651
        %v1722 = vunpack.c.l.b16 %v1652
        %v1723 = vunpack.c.l.b16 %v1653
        %v1724 = vunpack.c.l.b16 %v1654
        %v1725 = vunpack.c.l.b16 %v1655
        %v1726 = vunpack.c.l.b16 %v1656
        %v1727 = vunpack.c.l.b16 %v1657
        %v1728 = vunpack.c.l.b16 %v1658
        %v1729 = vunpack.c.l.b16 %v1659
        %v1730 = vunpack.c.l.b16 %v1660
        %v1731 = vunpack.c.l.b16 %v1661
        %v1732 = vunpack.c.l.b16 %v1662
        %v1733 = vunpack.c.l.b16 %v1663
        %v1734 = vunpack.c.l.b16 %v1664
        %v1735 = vunpack.c.l.b16 %v1665
        %v1736 = vunpack.c.l.b16 %v1666
        %v1737 = vunpack.c.l.b16 %v1667
        %v1738 = vunpack.c.l.b16 %v1668
        %v1739 = vpack.c.b16 %v1708, %v1707
        %v1740 = vpack.c.b16 %v1710, %v1709
        %v1741 = vpack.c.b16 %v1712, %v1711
        %v1742 = vpack.c.b16 %v1714, %v1713
        %v1743 = vpack.c.b16 %v1716, %v1715
        %v1744 = vpack.c.b16 %v1718, %v1717
        %v1745 = vpack.c.b16 %v1720, %v1719
        %v1746 = vpack.c.b16 %v1722, %v1721
        %v1747 = vpack.c.b16 %v1724, %v1723
        %v1748 = vpack.c.b16 %v1726, %v1725
        %v1749 = vpack.c.b16 %v1728, %v1727
        %v1750 = vpack.c.b16 %v1730, %v1729
        %v1751 = vpack.c.b16 %v1732, %v1731
        %v1752 = vpack.c.b16 %v1734, %v1733
        %v1753 = vpack.c.b16 %v1736, %v1735
        %v1754 = vpack.c.b16 %v1738, %v1737
        %1771 = vmatpush.bf16.msra.mxu0 %v1746
        %1772 = vmatpush.bf16.msra.mxu0 %v1745
        %1773 = vmatpush.bf16.msra.mxu0 %v1744
        %1774 = vmatpush.bf16.msra.mxu0 %v1743
        %1775 = vmatpush.bf16.msra.mxu0 %v1742
        %1776 = vmatpush.bf16.msra.mxu0 %v1741
        %1777 = vmatpush.bf16.msra.mxu0 %v1740
        %1778 = vmatpush.bf16.msra.mxu0 %v1739
        %1779 = vmatmul.bf16.gmra.mxu0 %v1671
        %v1780 = vpop.f32.mrf.mxu0
        %v1781 = vadd.f32 0.0, %v1780
        %v1782 = vpop.f32.mrf.mxu0
        %1783 = vdwg.mxu0
        %1784 = vmatpush.bf16.msra.mxu0 %v1754
        %1785 = vmatpush.bf16.msra.mxu0 %v1753
        %1786 = vmatpush.bf16.msra.mxu0 %v1752
        %1787 = vmatpush.bf16.msra.mxu0 %v1751
        %1788 = vmatpush.bf16.msra.mxu0 %v1750
        %1789 = vmatpush.bf16.msra.mxu0 %v1749
        %1790 = vmatpush.bf16.msra.mxu0 %v1748
        %1791 = vmatpush.bf16.msra.mxu0 %v1747
        %1792 = vmatmul.bf16.gmra.mxu0 %v1672
        %v1793 = vpop.f32.mrf.mxu0
        %v1794 = vadd.f32 %v1781, %v1793
        %v1795 = vpop.f32.mrf.mxu0
        %1796 = vdwg.mxu0
        %v1797 = vadd.f32 %v1635, %v1794
        %s1798 = scalar_lea.vmem %s3, 768
        %v1799 = vld [vmem:[%s1798] sm:$0xf]
        %v1800 = vld [vmem:[%s1798 + $0x4] sm:$0xf]
        %v1801 = vld [vmem:[%s1798 + $0x8] sm:$0xf]
        %v1802 = vld [vmem:[%s1798 + $0xc] sm:$0xf]
        %v1803 = vld [vmem:[%s1798 + $0x10] sm:$0xf]
        %v1804 = vld [vmem:[%s1798 + $0x14] sm:$0xf]
        %v1805 = vld [vmem:[%s1798 + $0x18] sm:$0xf]
        %v1806 = vld [vmem:[%s1798 + $0x1c] sm:$0xf]
        %v1807 = vld [vmem:[%s1798 + $0x20] sm:$0xf]
        %v1808 = vld [vmem:[%s1798 + $0x24] sm:$0xf]
        %v1809 = vld [vmem:[%s1798 + $0x28] sm:$0xf]
        %v1810 = vld [vmem:[%s1798 + $0x2c] sm:$0xf]
        %v1811 = vld [vmem:[%s1798 + $0x30] sm:$0xf]
        %v1812 = vld [vmem:[%s1798 + $0x34] sm:$0xf]
        %v1813 = vld [vmem:[%s1798 + $0x38] sm:$0xf]
        %v1814 = vld [vmem:[%s1798 + $0x3c] sm:$0xf]
        %v1815 = vld [vmem:[%s1798 + $0x40] sm:$0xf]
        %v1816 = vld [vmem:[%s1798 + $0x44] sm:$0xf]
        %v1817 = vld [vmem:[%s1798 + $0x48] sm:$0xf]
        %v1818 = vld [vmem:[%s1798 + $0x4c] sm:$0xf]
        %v1819 = vld [vmem:[%s1798 + $0x50] sm:$0xf]
        %v1820 = vld [vmem:[%s1798 + $0x54] sm:$0xf]
        %v1821 = vld [vmem:[%s1798 + $0x58] sm:$0xf]
        %v1822 = vld [vmem:[%s1798 + $0x5c] sm:$0xf]
        %v1823 = vld [vmem:[%s1798 + $0x60] sm:$0xf]
        %v1824 = vld [vmem:[%s1798 + $0x64] sm:$0xf]
        %v1825 = vld [vmem:[%s1798 + $0x68] sm:$0xf]
        %v1826 = vld [vmem:[%s1798 + $0x6c] sm:$0xf]
        %v1827 = vld [vmem:[%s1798 + $0x70] sm:$0xf]
        %v1828 = vld [vmem:[%s1798 + $0x74] sm:$0xf]
        %v1829 = vld [vmem:[%s1798 + $0x78] sm:$0xf]
        %v1830 = vld [vmem:[%s1798 + $0x7c] sm:$0xf]
        %v1831 = vunpack.c.l.b16 %v825
        %v1832 = vunpack.c.h.b16 %v825
        %v1833 = vpack.c.b16 %v1831, %v1831
        %v1834 = vpack.c.b16 %v1832, %v1832
        %v1869 = vunpack.c.l.b16 %v1799
        %v1870 = vunpack.c.l.b16 %v1800
        %v1871 = vunpack.c.l.b16 %v1801
        %v1872 = vunpack.c.l.b16 %v1802
        %v1873 = vunpack.c.l.b16 %v1803
        %v1874 = vunpack.c.l.b16 %v1804
        %v1875 = vunpack.c.l.b16 %v1805
        %v1876 = vunpack.c.l.b16 %v1806
        %v1877 = vunpack.c.l.b16 %v1807
        %v1878 = vunpack.c.l.b16 %v1808
        %v1879 = vunpack.c.l.b16 %v1809
        %v1880 = vunpack.c.l.b16 %v1810
        %v1881 = vunpack.c.l.b16 %v1811
        %v1882 = vunpack.c.l.b16 %v1812
        %v1883 = vunpack.c.l.b16 %v1813
        %v1884 = vunpack.c.l.b16 %v1814
        %v1885 = vunpack.c.l.b16 %v1815
        %v1886 = vunpack.c.l.b16 %v1816
        %v1887 = vunpack.c.l.b16 %v1817
        %v1888 = vunpack.c.l.b16 %v1818
        %v1889 = vunpack.c.l.b16 %v1819
        %v1890 = vunpack.c.l.b16 %v1820
        %v1891 = vunpack.c.l.b16 %v1821
        %v1892 = vunpack.c.l.b16 %v1822
        %v1893 = vunpack.c.l.b16 %v1823
        %v1894 = vunpack.c.l.b16 %v1824
        %v1895 = vunpack.c.l.b16 %v1825
        %v1896 = vunpack.c.l.b16 %v1826
        %v1897 = vunpack.c.l.b16 %v1827
        %v1898 = vunpack.c.l.b16 %v1828
        %v1899 = vunpack.c.l.b16 %v1829
        %v1900 = vunpack.c.l.b16 %v1830
        %v1901 = vpack.c.b16 %v1870, %v1869
        %v1902 = vpack.c.b16 %v1872, %v1871
        %v1903 = vpack.c.b16 %v1874, %v1873
        %v1904 = vpack.c.b16 %v1876, %v1875
        %v1905 = vpack.c.b16 %v1878, %v1877
        %v1906 = vpack.c.b16 %v1880, %v1879
        %v1907 = vpack.c.b16 %v1882, %v1881
        %v1908 = vpack.c.b16 %v1884, %v1883
        %v1909 = vpack.c.b16 %v1886, %v1885
        %v1910 = vpack.c.b16 %v1888, %v1887
        %v1911 = vpack.c.b16 %v1890, %v1889
        %v1912 = vpack.c.b16 %v1892, %v1891
        %v1913 = vpack.c.b16 %v1894, %v1893
        %v1914 = vpack.c.b16 %v1896, %v1895
        %v1915 = vpack.c.b16 %v1898, %v1897
        %v1916 = vpack.c.b16 %v1900, %v1899
        %1933 = vmatpush.bf16.msra.mxu0 %v1908
        %1934 = vmatpush.bf16.msra.mxu0 %v1907
        %1935 = vmatpush.bf16.msra.mxu0 %v1906
        %1936 = vmatpush.bf16.msra.mxu0 %v1905
        %1937 = vmatpush.bf16.msra.mxu0 %v1904
        %1938 = vmatpush.bf16.msra.mxu0 %v1903
        %1939 = vmatpush.bf16.msra.mxu0 %v1902
        %1940 = vmatpush.bf16.msra.mxu0 %v1901
        %1941 = vmatmul.bf16.gmra.mxu0 %v1833
        %v1942 = vpop.f32.mrf.mxu0
        %v1943 = vadd.f32 0.0, %v1942
        %v1944 = vpop.f32.mrf.mxu0
        %1945 = vdwg.mxu0
        %1946 = vmatpush.bf16.msra.mxu0 %v1916
        %1947 = vmatpush.bf16.msra.mxu0 %v1915
        %1948 = vmatpush.bf16.msra.mxu0 %v1914
        %1949 = vmatpush.bf16.msra.mxu0 %v1913
        %1950 = vmatpush.bf16.msra.mxu0 %v1912
        %1951 = vmatpush.bf16.msra.mxu0 %v1911
        %1952 = vmatpush.bf16.msra.mxu0 %v1910
        %1953 = vmatpush.bf16.msra.mxu0 %v1909
        %1954 = vmatmul.bf16.gmra.mxu0 %v1834
        %v1955 = vpop.f32.mrf.mxu0
        %v1956 = vadd.f32 %v1943, %v1955
        %v1957 = vpop.f32.mrf.mxu0
        %1958 = vdwg.mxu0
        %v1959 = vadd.f32 %v1797, %v1956
        %s1960 = scalar_lea.vmem %s3, 896
        %v1961 = vld [vmem:[%s1960] sm:$0xf]
        %v1962 = vld [vmem:[%s1960 + $0x4] sm:$0xf]
        %v1963 = vld [vmem:[%s1960 + $0x8] sm:$0xf]
        %v1964 = vld [vmem:[%s1960 + $0xc] sm:$0xf]
        %v1965 = vld [vmem:[%s1960 + $0x10] sm:$0xf]
        %v1966 = vld [vmem:[%s1960 + $0x14] sm:$0xf]
        %v1967 = vld [vmem:[%s1960 + $0x18] sm:$0xf]
        %v1968 = vld [vmem:[%s1960 + $0x1c] sm:$0xf]
        %v1969 = vld [vmem:[%s1960 + $0x20] sm:$0xf]
        %v1970 = vld [vmem:[%s1960 + $0x24] sm:$0xf]
        %v1971 = vld [vmem:[%s1960 + $0x28] sm:$0xf]
        %v1972 = vld [vmem:[%s1960 + $0x2c] sm:$0xf]
        %v1973 = vld [vmem:[%s1960 + $0x30] sm:$0xf]
        %v1974 = vld [vmem:[%s1960 + $0x34] sm:$0xf]
        %v1975 = vld [vmem:[%s1960 + $0x38] sm:$0xf]
        %v1976 = vld [vmem:[%s1960 + $0x3c] sm:$0xf]
        %v1977 = vld [vmem:[%s1960 + $0x40] sm:$0xf]
        %v1978 = vld [vmem:[%s1960 + $0x44] sm:$0xf]
        %v1979 = vld [vmem:[%s1960 + $0x48] sm:$0xf]
        %v1980 = vld [vmem:[%s1960 + $0x4c] sm:$0xf]
        %v1981 = vld [vmem:[%s1960 + $0x50] sm:$0xf]
        %v1982 = vld [vmem:[%s1960 + $0x54] sm:$0xf]
        %v1983 = vld [vmem:[%s1960 + $0x58] sm:$0xf]
        %v1984 = vld [vmem:[%s1960 + $0x5c] sm:$0xf]
        %v1985 = vld [vmem:[%s1960 + $0x60] sm:$0xf]
        %v1986 = vld [vmem:[%s1960 + $0x64] sm:$0xf]
        %v1987 = vld [vmem:[%s1960 + $0x68] sm:$0xf]
        %v1988 = vld [vmem:[%s1960 + $0x6c] sm:$0xf]
        %v1989 = vld [vmem:[%s1960 + $0x70] sm:$0xf]
        %v1990 = vld [vmem:[%s1960 + $0x74] sm:$0xf]
        %v1991 = vld [vmem:[%s1960 + $0x78] sm:$0xf]
        %v1992 = vld [vmem:[%s1960 + $0x7c] sm:$0xf]
        %v1993 = vunpack.c.l.b16 %v828
        %v1994 = vunpack.c.h.b16 %v828
        %v1995 = vpack.c.b16 %v1993, %v1993
        %v1996 = vpack.c.b16 %v1994, %v1994
        %v2031 = vunpack.c.l.b16 %v1961
        %v2032 = vunpack.c.l.b16 %v1962
        %v2033 = vunpack.c.l.b16 %v1963
        %v2034 = vunpack.c.l.b16 %v1964
        %v2035 = vunpack.c.l.b16 %v1965
        %v2036 = vunpack.c.l.b16 %v1966
        %v2037 = vunpack.c.l.b16 %v1967
        %v2038 = vunpack.c.l.b16 %v1968
        %v2039 = vunpack.c.l.b16 %v1969
        %v2040 = vunpack.c.l.b16 %v1970
        %v2041 = vunpack.c.l.b16 %v1971
        %v2042 = vunpack.c.l.b16 %v1972
        %v2043 = vunpack.c.l.b16 %v1973
        %v2044 = vunpack.c.l.b16 %v1974
        %v2045 = vunpack.c.l.b16 %v1975
        %v2046 = vunpack.c.l.b16 %v1976
        %v2047 = vunpack.c.l.b16 %v1977
        %v2048 = vunpack.c.l.b16 %v1978
        %v2049 = vunpack.c.l.b16 %v1979
        %v2050 = vunpack.c.l.b16 %v1980
        %v2051 = vunpack.c.l.b16 %v1981
        %v2052 = vunpack.c.l.b16 %v1982
        %v2053 = vunpack.c.l.b16 %v1983
        %v2054 = vunpack.c.l.b16 %v1984
        %v2055 = vunpack.c.l.b16 %v1985
        %v2056 = vunpack.c.l.b16 %v1986
        %v2057 = vunpack.c.l.b16 %v1987
        %v2058 = vunpack.c.l.b16 %v1988
        %v2059 = vunpack.c.l.b16 %v1989
        %v2060 = vunpack.c.l.b16 %v1990
        %v2061 = vunpack.c.l.b16 %v1991
        %v2062 = vunpack.c.l.b16 %v1992
        %v2063 = vpack.c.b16 %v2032, %v2031
        %v2064 = vpack.c.b16 %v2034, %v2033
        %v2065 = vpack.c.b16 %v2036, %v2035
        %v2066 = vpack.c.b16 %v2038, %v2037
        %v2067 = vpack.c.b16 %v2040, %v2039
        %v2068 = vpack.c.b16 %v2042, %v2041
        %v2069 = vpack.c.b16 %v2044, %v2043
        %v2070 = vpack.c.b16 %v2046, %v2045
        %v2071 = vpack.c.b16 %v2048, %v2047
        %v2072 = vpack.c.b16 %v2050, %v2049
        %v2073 = vpack.c.b16 %v2052, %v2051
        %v2074 = vpack.c.b16 %v2054, %v2053
        %v2075 = vpack.c.b16 %v2056, %v2055
        %v2076 = vpack.c.b16 %v2058, %v2057
        %v2077 = vpack.c.b16 %v2060, %v2059
        %v2078 = vpack.c.b16 %v2062, %v2061
        %2095 = vmatpush.bf16.msra.mxu0 %v2070
        %2096 = vmatpush.bf16.msra.mxu0 %v2069
        %2097 = vmatpush.bf16.msra.mxu0 %v2068
        %2098 = vmatpush.bf16.msra.mxu0 %v2067
        %2099 = vmatpush.bf16.msra.mxu0 %v2066
        %2100 = vmatpush.bf16.msra.mxu0 %v2065
        %2101 = vmatpush.bf16.msra.mxu0 %v2064
        %2102 = vmatpush.bf16.msra.mxu0 %v2063
        %2103 = vmatmul.bf16.gmra.mxu0 %v1995
        %v2104 = vpop.f32.mrf.mxu0
        %v2105 = vadd.f32 0.0, %v2104
        %v2106 = vpop.f32.mrf.mxu0
        %2107 = vdwg.mxu0
        %2108 = vmatpush.bf16.msra.mxu0 %v2078
        %2109 = vmatpush.bf16.msra.mxu0 %v2077
        %2110 = vmatpush.bf16.msra.mxu0 %v2076
        %2111 = vmatpush.bf16.msra.mxu0 %v2075
        %2112 = vmatpush.bf16.msra.mxu0 %v2074
        %2113 = vmatpush.bf16.msra.mxu0 %v2073
        %2114 = vmatpush.bf16.msra.mxu0 %v2072
        %2115 = vmatpush.bf16.msra.mxu0 %v2071
        %2116 = vmatmul.bf16.gmra.mxu0 %v1996
        %v2117 = vpop.f32.mrf.mxu0
        %v2118 = vadd.f32 %v2105, %v2117
        %v2119 = vpop.f32.mrf.mxu0
        %2120 = vdwg.mxu0
        %v2121 = vadd.f32 %v1959, %v2118
        %v2122 = vld [vmem:[%s4] sm:$0x1]
        %v2124 = vperm.slane %v2122, 0
        %vm2126 = vcmp.ge.f32.partialorder %v2121, %v2124
        %v2127 = vsel %vm2126, 1, 0
        %v2128 = vcvt.s32.f32 %v2127
        %vm2129 = vcmask 80896
        %2130 = vst.msk [vmem:[%s217] sm:$0xff] %vm2129, %v2128
        %s2131 = sand.u32 %s137, 1
        %s2132 = scalar_lea.sflag [#allocation3], %s2131
        %s2133 = sand.u32 %s137, 1
        %s2134 = smul.addr %s2133, 8
        %s2135 = scalar_lea.vmem [#allocation2], %s2134
        // Predicated region
        $region41: #{net_forward.1} parent=39 // pred_check
          %p2136 = pneg %p147
        $region42: #{net_forward.1} parent=39 // pred_check_branch
          %2138 = sbr.rel (%p2136) target = $region44
        $region43: #{net_forward.1} parent=39 // pred_region
          %2140 = vsyncadd %s2132, 0
          %s2141 = smul.addr %s19, 8
          %s2142 = scalar_lea.hbm %s5, %s2141
          %s2144 = sshll.u32 %s2135, 4
          %s2145 = int_to_ptr.vmem [resolvable:$true] %s2144
          %s2146 = sshll.u32 %s2142, 4
          %s2147 = int_to_ptr.hbm [resolvable:$true] %s2146
          %2149 = dma.vmem_to_hbm [thread:$0]  %s2145, 128, %s2147, %s2132
        $region44: #{net_forward.1} parent=39 // pred_fallthru
          _
      $region40: #{net_forward.1} parent=5 // pred_fallthru
        _
      %p2150 = scmp.le.s32.totalorder 2, %s14
      // Predicated region
      $region45: #{net_forward.1} parent=5 // pred_check
        %p2151 = pneg %p2150
      $region46: #{net_forward.1} parent=5 // pred_check_branch
        %2153 = sbr.rel (%p2151) target = $region48
      $region47: #{net_forward.1} parent=5 // pred_region
        %s2154 = ssub.s32 %s14, 2
        // Predicated region
        $region49: #{net_forward.1} parent=47 // pred_check
          %p2155 = pneg %p153
        $region50: #{net_forward.1} parent=47 // pred_check_branch
          %2157 = sbr.rel (%p2155) target = $region52
        $region51: #{net_forward.1} parent=47 // pred_region
          %s2158 = sand.u32 %s138, 1
          %s2159 = scalar_lea.sflag [#allocation3], %s2158
          %s2160 = sand.u32 %s138, 1
          %s2161 = smul.addr %s2160, 8
          %s2162 = scalar_lea.vmem [#allocation2], %s2161
          %2164 = dma.done %s2159, 128
        $region52: #{net_forward.1} parent=47 // pred_fallthru
          _
      $region48: #{net_forward.1} parent=5 // pred_fallthru
        _
    $region6: #{net_forward.1} parent=1 // loop_footer
      %s18 = sadd.s32 1, %s14
    $region7: #{net_forward.1} parent=1 // loop_footer_branch
      %13 = sbr.rel target = $region3
    $region8: #{net_forward.1} parent=1 // loop_exit
      _
    %2165 = vsyncpa [#allocation3], 1
    %s2166 = scalar_lea.sflag [#allocation3], 1
    %2167 = vsyncpa %s2166, 1

</llo_original>
